<compile_context>
chip_gen: v5e
topology: v5e:2x2
jax: 0.10.0
libtpu: 0.0.40
codegen_flags: <defaults>
</compile_context>

<pallas_src>
import functools

import jax
import jax.numpy as jnp
from jax import lax
from jax.experimental import pallas as pl
from jax.experimental.pallas import tpu as pltpu


# ---------------- configuration (mirrors the args object of the PyTorch code) ----
class Args:
    embedding_dim = 32     # input_dim == Q/K/V input dim
    d_head = 8
    n_head = 4
    d_hidn = 64            # unused in forward (kept for fidelity)


# Contract on the last dim of both operands == q @ k.T without materializing k.T.
_NT_DIMS = (((1,), (1,)), ((), ()))


# ---------------- Pallas kernel --------------------------------------------------
def mha_kernel(q_ref, k_ref, v_ref,
               wq_ref, wk_ref, wv_ref,     # (E, HD) each, pre-transposed
               bq_ref, bk_ref, bv_ref,     # (1, HD) each
               wo_ref, bo_ref,             # (HD, E), (1, E), pre-transposed
               out_ref, attn_ref, ctx_ref,
               ctx_scratch,                # VMEM (S, HD) f32
               *, n_head, d_head, scale):
    # q_ref/k_ref/v_ref: (1, S, E) blocks for the current batch element
    q = q_ref[0]          # (S, E)
    k = k_ref[0]
    v = v_ref[0]

    # ---- fused QKV projections: three (S,E)@(E,HD) MXU matmuls, f32 accumulate ----
    q_all = jnp.dot(q, wq_ref[...], preferred_element_type=jnp.float32) + bq_ref[...]
    k_all = jnp.dot(k, wk_ref[...], preferred_element_type=jnp.float32) + bk_ref[...]
    v_all = jnp.dot(v, wv_ref[...], preferred_element_type=jnp.float32) + bv_ref[...]

    # ---- per-head scaled dot-product attention (n_head small & static: unrolled) ----
    for h in range(n_head):
        s0 = h * d_head
        q_h = q_all[:, s0:s0 + d_head]          # (S, D) static lane slice
        k_h = k_all[:, s0:s0 + d_head]
        v_h = v_all[:, s0:s0 + d_head]

        # scores = q_h @ k_h^T without an in-kernel transpose
        scores = lax.dot_general(q_h, k_h, _NT_DIMS,
                                 preferred_element_type=jnp.float32) * scale
        scores = scores - jnp.max(scores, axis=-1, keepdims=True)
        p = jnp.exp(scores)
        # exact reciprocal: keeps attn_prob bit-accurate to the reference softmax
        attn = p * pl.reciprocal(jnp.sum(p, axis=-1, keepdims=True), approx=False)

        ctx_h = jnp.dot(attn, v_h, preferred_element_type=jnp.float32)   # (S, D)

        attn_ref[0, h] = attn.astype(attn_ref.dtype)
        ctx_scratch[:, s0:s0 + d_head] = ctx_h

    # ---- fused output projection: single (S,HD)@(HD,E) matmul + bias ----
    ctx_all = ctx_scratch[...]                                            # (S, HD)
    ctx_ref[0] = ctx_all.astype(ctx_ref.dtype)
    out_ref[0] = (jnp.dot(ctx_all, wo_ref[...], preferred_element_type=jnp.float32)
                  + bo_ref[...]).astype(out_ref.dtype)


# ---------------- wrapper ---------------------------------------------------------
def multi_head_attention(Q, K, V, params, *, n_head, d_head):
    """Q, K, V: (B, S, E) float32.  Returns (output, attn_prob, context)."""
    B, S, E = Q.shape
    HD = n_head * d_head
    scale = 1.0 / (d_head ** 0.5)

    # Layout plumbing in plain JAX (free outside the kernel).
    # nn.Linear: y = x @ W^T + b with W of shape (out, in) -> pass W^T.
    wq = params["W_Q"]["w"].T              # (E, HD)
    wk = params["W_K"]["w"].T              # (E, HD)
    wv = params["W_V"]["w"].T              # (E, HD)
    bq = params["W_Q"]["b"].reshape(1, HD)
    bk = params["W_K"]["b"].reshape(1, HD)
    bv = params["W_V"]["b"].reshape(1, HD)
    wo = params["linear"]["w"].T           # (HD, E)
    bo = params["linear"]["b"].reshape(1, E)

    full = lambda a: pl.BlockSpec(a.shape, lambda b: (0,) * a.ndim)

    kernel = functools.partial(mha_kernel, n_head=n_head, d_head=d_head, scale=scale)

    out_shapes = (
        jax.ShapeDtypeStruct((B, S, E), jnp.float32),          # output
        jax.ShapeDtypeStruct((B, n_head, S, S), jnp.float32),  # attn_prob
        jax.ShapeDtypeStruct((B, S, HD), jnp.float32),         # context
    )

    return pl.pallas_call(
        kernel,
        out_shape=out_shapes,
        grid_spec=pltpu.PrefetchScalarGridSpec(
            num_scalar_prefetch=0,
            grid=(B,),
            in_specs=[
                pl.BlockSpec((1, S, E), lambda b: (b, 0, 0)),   # Q
                pl.BlockSpec((1, S, E), lambda b: (b, 0, 0)),   # K
                pl.BlockSpec((1, S, E), lambda b: (b, 0, 0)),   # V
                full(wq), full(wk), full(wv),
                full(bq), full(bk), full(bv),
                full(wo), full(bo),
            ],
            out_specs=[
                pl.BlockSpec((1, S, E), lambda b: (b, 0, 0)),
                pl.BlockSpec((1, n_head, S, S), lambda b: (b, 0, 0, 0)),
                pl.BlockSpec((1, S, HD), lambda b: (b, 0, 0)),
            ],
            scratch_shapes=[pltpu.VMEM((S, HD), jnp.float32)],
        ),
        compiler_params=pltpu.CompilerParams(dimension_semantics=("parallel",)),
    )(Q, K, V, wq, wk, wv, bq, bk, bv, wo, bo)


# ---------------- pure-JAX reference (for verification) ---------------------------
def mha_reference(Q, K, V, params, *, n_head, d_head):
    B, S, E = Q.shape
    scale = 1.0 / (d_head ** 0.5)
    lin = lambda x, p: x @ p["w"].T + p["b"]
    q_s = lin(Q, params["W_Q"]).reshape(B, S, n_head, d_head).transpose(0, 2, 1, 3)
    k_s = lin(K, params["W_K"]).reshape(B, S, n_head, d_head).transpose(0, 2, 1, 3)
    v_s = lin(V, params["W_V"]).reshape(B, S, n_head, d_head).transpose(0, 2, 1, 3)
    scores = jnp.einsum("bhqd,bhkd->bhqk", q_s, k_s) * scale
    attn = jax.nn.softmax(scores, axis=-1)
    ctx = jnp.einsum("bhqk,bhkd->bhqd", attn, v_s)
    ctx = ctx.transpose(0, 2, 1, 3).reshape(B, S, n_head * d_head)
    out = lin(ctx, params["linear"])
    return out, attn, ctx


# ---------------- main -------------------------------------------------------------
if __name__ == "__main__":
    args = Args()
    B, S, E = 2, 8, args.embedding_dim
    H, D = args.n_head, args.d_head
    HD = H * D

    key = jax.random.PRNGKey(0)
    keys = jax.random.split(key, 12)

    def init_linear(kw, kb, out_f, in_f):
        lim = 1.0 / (in_f ** 0.5)
        w = jax.random.uniform(kw, (out_f, in_f), jnp.float32, -lim, lim)
        b = jax.random.uniform(kb, (out_f,), jnp.float32, -lim, lim)
        return {"w": w, "b": b}

    params = {
        "W_Q": init_linear(keys[0], keys[1], HD, E),
        "W_K": init_linear(keys[2], keys[3], HD, E),
        "W_V": init_linear(keys[4], keys[5], HD, E),
        "linear": init_linear(keys[6], keys[7], E, HD),
    }

    Q = jax.random.normal(keys[8], (B, S, E), jnp.float32)
    K = jax.random.normal(keys[9], (B, S, E), jnp.float32)
    V = jax.random.normal(keys[10], (B, S, E), jnp.float32)

    out, attn, ctx = multi_head_attention(Q, K, V, params, n_head=H, d_head=D)
    jax.block_until_ready((out, attn, ctx))

    out_r, attn_r, ctx_r = mha_reference(Q, K, V, params, n_head=H, d_head=D)
    assert out.shape == (B, S, E) and attn.shape == (B, H, S, S) and ctx.shape == (B, S, HD)
    assert jnp.allclose(out, out_r, atol=1e-4, rtol=1e-4)
    assert jnp.allclose(attn, attn_r, atol=1e-4, rtol=1e-4)
    assert jnp.allclose(ctx, ctx_r, atol=1e-4, rtol=1e-4)

    print("KERNEL_OK")
</pallas_src>

<mosaic_0001>
module attributes {stable_mosaic.version = 11 : i64} {
  func.func @mha_kernel(%arg0: i32, %arg1: memref<1x8x32xf32, #tpu.memory_space<vmem>>, %arg2: memref<1x8x32xf32, #tpu.memory_space<vmem>>, %arg3: memref<1x8x32xf32, #tpu.memory_space<vmem>>, %arg4: memref<32x32xf32, #tpu.memory_space<vmem>>, %arg5: memref<32x32xf32, #tpu.memory_space<vmem>>, %arg6: memref<32x32xf32, #tpu.memory_space<vmem>>, %arg7: memref<1x32xf32, #tpu.memory_space<vmem>>, %arg8: memref<1x32xf32, #tpu.memory_space<vmem>>, %arg9: memref<1x32xf32, #tpu.memory_space<vmem>>, %arg10: memref<32x32xf32, #tpu.memory_space<vmem>>, %arg11: memref<1x32xf32, #tpu.memory_space<vmem>>, %arg12: memref<1x8x32xf32, #tpu.memory_space<vmem>>, %arg13: memref<1x4x8x8xf32, #tpu.memory_space<vmem>>, %arg14: memref<1x8x32xf32, #tpu.memory_space<vmem>>, %arg15: memref<8x32xf32, #tpu.memory_space<vmem>>) attributes {dimension_semantics = [#tpu.dimension_semantics<parallel>], iteration_bounds = array<i64: 2>, scalar_prefetch = 0 : i64, scratch_operands = 1 : i64, tpu.core_type = #tpu.core_type<tc>, window_params = [{transform_indices = @transform_0, window_bounds = array<i64: 1, 8, 32>}, {transform_indices = @transform_1, window_bounds = array<i64: 1, 8, 32>}, {transform_indices = @transform_2, window_bounds = array<i64: 1, 8, 32>}, {pipeline_mode = #tpu.pipeline_mode<synchronous>, transform_indices = @transform_3, window_bounds = array<i64: 32, 32>}, {pipeline_mode = #tpu.pipeline_mode<synchronous>, transform_indices = @transform_4, window_bounds = array<i64: 32, 32>}, {pipeline_mode = #tpu.pipeline_mode<synchronous>, transform_indices = @transform_5, window_bounds = array<i64: 32, 32>}, {pipeline_mode = #tpu.pipeline_mode<synchronous>, transform_indices = @transform_6, window_bounds = array<i64: 1, 32>}, {pipeline_mode = #tpu.pipeline_mode<synchronous>, transform_indices = @transform_7, window_bounds = array<i64: 1, 32>}, {pipeline_mode = #tpu.pipeline_mode<synchronous>, transform_indices = @transform_8, window_bounds = array<i64: 1, 32>}, {pipeline_mode = #tpu.pipeline_mode<synchronous>, transform_indices = @transform_9, window_bounds = array<i64: 32, 32>}, {pipeline_mode = #tpu.pipeline_mode<synchronous>, transform_indices = @transform_10, window_bounds = array<i64: 1, 32>}, {transform_indices = @transform_11, window_bounds = array<i64: 1, 8, 32>}, {transform_indices = @transform_12, window_bounds = array<i64: 1, 4, 8, 8>}, {transform_indices = @transform_13, window_bounds = array<i64: 1, 8, 32>}]} {
    %c0 = arith.constant 0 : index
    %c0_0 = arith.constant 0 : index
    %c0_1 = arith.constant 0 : index
    %0 = vector.load %arg1[%c0, %c0_0, %c0_1] : memref<1x8x32xf32, #tpu.memory_space<vmem>>, vector<1x8x32xf32>
    %1 = vector.shape_cast %0 : vector<1x8x32xf32> to vector<8x32xf32>
    %c0_2 = arith.constant 0 : index
    %c0_3 = arith.constant 0 : index
    %c0_4 = arith.constant 0 : index
    %2 = vector.load %arg2[%c0_2, %c0_3, %c0_4] : memref<1x8x32xf32, #tpu.memory_space<vmem>>, vector<1x8x32xf32>
    %3 = vector.shape_cast %2 : vector<1x8x32xf32> to vector<8x32xf32>
    %c0_5 = arith.constant 0 : index
    %c0_6 = arith.constant 0 : index
    %c0_7 = arith.constant 0 : index
    %4 = vector.load %arg3[%c0_5, %c0_6, %c0_7] : memref<1x8x32xf32, #tpu.memory_space<vmem>>, vector<1x8x32xf32>
    %5 = vector.shape_cast %4 : vector<1x8x32xf32> to vector<8x32xf32>
    %c0_8 = arith.constant 0 : index
    %c0_9 = arith.constant 0 : index
    %6 = vector.load %arg4[%c0_8, %c0_9] : memref<32x32xf32, #tpu.memory_space<vmem>>, vector<32x32xf32>
    %cst = arith.constant dense<0.000000e+00> : vector<8x32xf32>
    %7 = tpu.matmul %1, %6, %cst {dimension_numbers = #tpu.dot_dimension_numbers<[1], [0], [0], [1], [0, 0, 1, 1], [], []>} : vector<8x32xf32>, vector<32x32xf32>, vector<8x32xf32> -> vector<8x32xf32>
    %c0_10 = arith.constant 0 : index
    %c0_11 = arith.constant 0 : index
    %8 = vector.load %arg7[%c0_10, %c0_11] : memref<1x32xf32, #tpu.memory_space<vmem>>, vector<1x32xf32>
    %9 = vector.broadcast %8 : vector<1x32xf32> to vector<8x32xf32>
    %10 = arith.addf %7, %9 : vector<8x32xf32>
    %c0_12 = arith.constant 0 : index
    %c0_13 = arith.constant 0 : index
    %11 = vector.load %arg5[%c0_12, %c0_13] : memref<32x32xf32, #tpu.memory_space<vmem>>, vector<32x32xf32>
    %cst_14 = arith.constant dense<0.000000e+00> : vector<8x32xf32>
    %12 = tpu.matmul %3, %11, %cst_14 {dimension_numbers = #tpu.dot_dimension_numbers<[1], [0], [0], [1], [0, 0, 1, 1], [], []>} : vector<8x32xf32>, vector<32x32xf32>, vector<8x32xf32> -> vector<8x32xf32>
    %c0_15 = arith.constant 0 : index
    %c0_16 = arith.constant 0 : index
    %13 = vector.load %arg8[%c0_15, %c0_16] : memref<1x32xf32, #tpu.memory_space<vmem>>, vector<1x32xf32>
    %14 = vector.broadcast %13 : vector<1x32xf32> to vector<8x32xf32>
    %15 = arith.addf %12, %14 : vector<8x32xf32>
    %c0_17 = arith.constant 0 : index
    %c0_18 = arith.constant 0 : index
    %16 = vector.load %arg6[%c0_17, %c0_18] : memref<32x32xf32, #tpu.memory_space<vmem>>, vector<32x32xf32>
    %cst_19 = arith.constant dense<0.000000e+00> : vector<8x32xf32>
    %17 = tpu.matmul %5, %16, %cst_19 {dimension_numbers = #tpu.dot_dimension_numbers<[1], [0], [0], [1], [0, 0, 1, 1], [], []>} : vector<8x32xf32>, vector<32x32xf32>, vector<8x32xf32> -> vector<8x32xf32>
    %c0_20 = arith.constant 0 : index
    %c0_21 = arith.constant 0 : index
    %18 = vector.load %arg9[%c0_20, %c0_21] : memref<1x32xf32, #tpu.memory_space<vmem>>, vector<1x32xf32>
    %19 = vector.broadcast %18 : vector<1x32xf32> to vector<8x32xf32>
    %20 = arith.addf %17, %19 : vector<8x32xf32>
    %21 = vector.extract_strided_slice %10 {offsets = [0, 0], sizes = [8, 8], strides = [1, 1]} : vector<8x32xf32> to vector<8x8xf32>
    %22 = vector.extract_strided_slice %15 {offsets = [0, 0], sizes = [8, 8], strides = [1, 1]} : vector<8x32xf32> to vector<8x8xf32>
    %23 = vector.extract_strided_slice %20 {offsets = [0, 0], sizes = [8, 8], strides = [1, 1]} : vector<8x32xf32> to vector<8x8xf32>
    %cst_22 = arith.constant dense<0.000000e+00> : vector<8x8xf32>
    %24 = tpu.matmul %21, %22, %cst_22 {dimension_numbers = #tpu.dot_dimension_numbers<[1], [1], [0], [0], [0, 0, 1, 0], [], []>} : vector<8x8xf32>, vector<8x8xf32>, vector<8x8xf32> -> vector<8x8xf32>
    %cst_23 = arith.constant 0.353553385 : f32
    %25 = vector.broadcast %cst_23 : f32 to vector<8x8xf32>
    %26 = arith.mulf %24, %25 : vector<8x8xf32>
    %cst_24 = arith.constant dense<0xFF800000> : vector<8xf32>
    %27 = vector.multi_reduction <maximumf>, %26, %cst_24 [1] : vector<8x8xf32> to vector<8xf32>
    %28 = vector.shape_cast %27 : vector<8xf32> to vector<8x1xf32>
    %29 = vector.broadcast %28 : vector<8x1xf32> to vector<8x8xf32>
    %30 = arith.subf %26, %29 : vector<8x8xf32>
    %31 = math.exp %30 : vector<8x8xf32>
    %cst_25 = arith.constant dense<0.000000e+00> : vector<8xf32>
    %32 = vector.multi_reduction <add>, %31, %cst_25 [1] : vector<8x8xf32> to vector<8xf32>
    %33 = vector.shape_cast %32 : vector<8xf32> to vector<8x1xf32>
    %34 = tpu.reciprocal %33 : vector<8x1xf32> -> vector<8x1xf32>
    %35 = vector.broadcast %34 : vector<8x1xf32> to vector<8x8xf32>
    %36 = arith.mulf %31, %35 : vector<8x8xf32>
    %cst_26 = arith.constant dense<0.000000e+00> : vector<8x8xf32>
    %37 = tpu.matmul %36, %23, %cst_26 {dimension_numbers = #tpu.dot_dimension_numbers<[1], [0], [0], [1], [0, 0, 1, 1], [], []>} : vector<8x8xf32>, vector<8x8xf32>, vector<8x8xf32> -> vector<8x8xf32>
    %c0_27 = arith.constant 0 : index
    %c0_28 = arith.constant 0 : index
    %c0_29 = arith.constant 0 : index
    %c0_30 = arith.constant 0 : index
    %38 = vector.load %arg13[%c0_27, %c0_28, %c0_29, %c0_30] : memref<1x4x8x8xf32, #tpu.memory_space<vmem>>, vector<1x1x8x8xf32>
    %39 = vector.shape_cast %38 : vector<1x1x8x8xf32> to vector<8x8xf32>
    %40 = vector.shape_cast %36 : vector<8x8xf32> to vector<1x1x8x8xf32>
    tpu.vector_store %arg13[%c0_27, %c0_28, %c0_29, %c0_30], %40 {strides = array<i32>} : memref<1x4x8x8xf32, #tpu.memory_space<vmem>>, vector<1x1x8x8xf32>,
    %c0_31 = arith.constant 0 : index
    %c0_32 = arith.constant 0 : index
    %41 = vector.load %arg15[%c0_31, %c0_32] : memref<8x32xf32, #tpu.memory_space<vmem>>, vector<8x8xf32>
    tpu.vector_store %arg15[%c0_31, %c0_32], %37 {strides = array<i32>} : memref<8x32xf32, #tpu.memory_space<vmem>>, vector<8x8xf32>,
    %42 = vector.extract_strided_slice %10 {offsets = [0, 8], sizes = [8, 8], strides = [1, 1]} : vector<8x32xf32> to vector<8x8xf32>
    %43 = vector.extract_strided_slice %15 {offsets = [0, 8], sizes = [8, 8], strides = [1, 1]} : vector<8x32xf32> to vector<8x8xf32>
    %44 = vector.extract_strided_slice %20 {offsets = [0, 8], sizes = [8, 8], strides = [1, 1]} : vector<8x32xf32> to vector<8x8xf32>
    %cst_33 = arith.constant dense<0.000000e+00> : vector<8x8xf32>
    %45 = tpu.matmul %42, %43, %cst_33 {dimension_numbers = #tpu.dot_dimension_numbers<[1], [1], [0], [0], [0, 0, 1, 0], [], []>} : vector<8x8xf32>, vector<8x8xf32>, vector<8x8xf32> -> vector<8x8xf32>
    %cst_34 = arith.constant 0.353553385 : f32
    %46 = vector.broadcast %cst_34 : f32 to vector<8x8xf32>
    %47 = arith.mulf %45, %46 : vector<8x8xf32>
    %cst_35 = arith.constant dense<0xFF800000> : vector<8xf32>
    %48 = vector.multi_reduction <maximumf>, %47, %cst_35 [1] : vector<8x8xf32> to vector<8xf32>
    %49 = vector.shape_cast %48 : vector<8xf32> to vector<8x1xf32>
    %50 = vector.broadcast %49 : vector<8x1xf32> to vector<8x8xf32>
    %51 = arith.subf %47, %50 : vector<8x8xf32>
    %52 = math.exp %51 : vector<8x8xf32>
    %cst_36 = arith.constant dense<0.000000e+00> : vector<8xf32>
    %53 = vector.multi_reduction <add>, %52, %cst_36 [1] : vector<8x8xf32> to vector<8xf32>
    %54 = vector.shape_cast %53 : vector<8xf32> to vector<8x1xf32>
    %55 = tpu.reciprocal %54 : vector<8x1xf32> -> vector<8x1xf32>
    %56 = vector.broadcast %55 : vector<8x1xf32> to vector<8x8xf32>
    %57 = arith.mulf %52, %56 : vector<8x8xf32>
    %cst_37 = arith.constant dense<0.000000e+00> : vector<8x8xf32>
    %58 = tpu.matmul %57, %44, %cst_37 {dimension_numbers = #tpu.dot_dimension_numbers<[1], [0], [0], [1], [0, 0, 1, 1], [], []>} : vector<8x8xf32>, vector<8x8xf32>, vector<8x8xf32> -> vector<8x8xf32>
    %c0_38 = arith.constant 0 : index
    %c1 = arith.constant 1 : index
    %c0_39 = arith.constant 0 : index
    %c0_40 = arith.constant 0 : index
    %59 = vector.load %arg13[%c0_38, %c1, %c0_39, %c0_40] : memref<1x4x8x8xf32, #tpu.memory_space<vmem>>, vector<1x1x8x8xf32>
    %60 = vector.shape_cast %59 : vector<1x1x8x8xf32> to vector<8x8xf32>
    %61 = vector.shape_cast %57 : vector<8x8xf32> to vector<1x1x8x8xf32>
    tpu.vector_store %arg13[%c0_38, %c1, %c0_39, %c0_40], %61 {strides = array<i32>} : memref<1x4x8x8xf32, #tpu.memory_space<vmem>>, vector<1x1x8x8xf32>,
    %c0_41 = arith.constant 0 : index
    %c8 = arith.constant 8 : index
    %62 = vector.load %arg15[%c0_41, %c8] : memref<8x32xf32, #tpu.memory_space<vmem>>, vector<8x8xf32>
    tpu.vector_store %arg15[%c0_41, %c8], %58 {strides = array<i32>} : memref<8x32xf32, #tpu.memory_space<vmem>>, vector<8x8xf32>,
    %63 = vector.extract_strided_slice %10 {offsets = [0, 16], sizes = [8, 8], strides = [1, 1]} : vector<8x32xf32> to vector<8x8xf32>
    %64 = vector.extract_strided_slice %15 {offsets = [0, 16], sizes = [8, 8], strides = [1, 1]} : vector<8x32xf32> to vector<8x8xf32>
    %65 = vector.extract_strided_slice %20 {offsets = [0, 16], sizes = [8, 8], strides = [1, 1]} : vector<8x32xf32> to vector<8x8xf32>
    %cst_42 = arith.constant dense<0.000000e+00> : vector<8x8xf32>
    %66 = tpu.matmul %63, %64, %cst_42 {dimension_numbers = #tpu.dot_dimension_numbers<[1], [1], [0], [0], [0, 0, 1, 0], [], []>} : vector<8x8xf32>, vector<8x8xf32>, vector<8x8xf32> -> vector<8x8xf32>
    %cst_43 = arith.constant 0.353553385 : f32
    %67 = vector.broadcast %cst_43 : f32 to vector<8x8xf32>
    %68 = arith.mulf %66, %67 : vector<8x8xf32>
    %cst_44 = arith.constant dense<0xFF800000> : vector<8xf32>
    %69 = vector.multi_reduction <maximumf>, %68, %cst_44 [1] : vector<8x8xf32> to vector<8xf32>
    %70 = vector.shape_cast %69 : vector<8xf32> to vector<8x1xf32>
    %71 = vector.broadcast %70 : vector<8x1xf32> to vector<8x8xf32>
    %72 = arith.subf %68, %71 : vector<8x8xf32>
    %73 = math.exp %72 : vector<8x8xf32>
    %cst_45 = arith.constant dense<0.000000e+00> : vector<8xf32>
    %74 = vector.multi_reduction <add>, %73, %cst_45 [1] : vector<8x8xf32> to vector<8xf32>
    %75 = vector.shape_cast %74 : vector<8xf32> to vector<8x1xf32>
    %76 = tpu.reciprocal %75 : vector<8x1xf32> -> vector<8x1xf32>
    %77 = vector.broadcast %76 : vector<8x1xf32> to vector<8x8xf32>
    %78 = arith.mulf %73, %77 : vector<8x8xf32>
    %cst_46 = arith.constant dense<0.000000e+00> : vector<8x8xf32>
    %79 = tpu.matmul %78, %65, %cst_46 {dimension_numbers = #tpu.dot_dimension_numbers<[1], [0], [0], [1], [0, 0, 1, 1], [], []>} : vector<8x8xf32>, vector<8x8xf32>, vector<8x8xf32> -> vector<8x8xf32>
    %c0_47 = arith.constant 0 : index
    %c2 = arith.constant 2 : index
    %c0_48 = arith.constant 0 : index
    %c0_49 = arith.constant 0 : index
    %80 = vector.load %arg13[%c0_47, %c2, %c0_48, %c0_49] : memref<1x4x8x8xf32, #tpu.memory_space<vmem>>, vector<1x1x8x8xf32>
    %81 = vector.shape_cast %80 : vector<1x1x8x8xf32> to vector<8x8xf32>
    %82 = vector.shape_cast %78 : vector<8x8xf32> to vector<1x1x8x8xf32>
    tpu.vector_store %arg13[%c0_47, %c2, %c0_48, %c0_49], %82 {strides = array<i32>} : memref<1x4x8x8xf32, #tpu.memory_space<vmem>>, vector<1x1x8x8xf32>,
    %c0_50 = arith.constant 0 : index
    %c16 = arith.constant 16 : index
    %83 = vector.load %arg15[%c0_50, %c16] : memref<8x32xf32, #tpu.memory_space<vmem>>, vector<8x8xf32>
    tpu.vector_store %arg15[%c0_50, %c16], %79 {strides = array<i32>} : memref<8x32xf32, #tpu.memory_space<vmem>>, vector<8x8xf32>,
    %84 = vector.extract_strided_slice %10 {offsets = [0, 24], sizes = [8, 8], strides = [1, 1]} : vector<8x32xf32> to vector<8x8xf32>
    %85 = vector.extract_strided_slice %15 {offsets = [0, 24], sizes = [8, 8], strides = [1, 1]} : vector<8x32xf32> to vector<8x8xf32>
    %86 = vector.extract_strided_slice %20 {offsets = [0, 24], sizes = [8, 8], strides = [1, 1]} : vector<8x32xf32> to vector<8x8xf32>
    %cst_51 = arith.constant dense<0.000000e+00> : vector<8x8xf32>
    %87 = tpu.matmul %84, %85, %cst_51 {dimension_numbers = #tpu.dot_dimension_numbers<[1], [1], [0], [0], [0, 0, 1, 0], [], []>} : vector<8x8xf32>, vector<8x8xf32>, vector<8x8xf32> -> vector<8x8xf32>
    %cst_52 = arith.constant 0.353553385 : f32
    %88 = vector.broadcast %cst_52 : f32 to vector<8x8xf32>
    %89 = arith.mulf %87, %88 : vector<8x8xf32>
    %cst_53 = arith.constant dense<0xFF800000> : vector<8xf32>
    %90 = vector.multi_reduction <maximumf>, %89, %cst_53 [1] : vector<8x8xf32> to vector<8xf32>
    %91 = vector.shape_cast %90 : vector<8xf32> to vector<8x1xf32>
    %92 = vector.broadcast %91 : vector<8x1xf32> to vector<8x8xf32>
    %93 = arith.subf %89, %92 : vector<8x8xf32>
    %94 = math.exp %93 : vector<8x8xf32>
    %cst_54 = arith.constant dense<0.000000e+00> : vector<8xf32>
    %95 = vector.multi_reduction <add>, %94, %cst_54 [1] : vector<8x8xf32> to vector<8xf32>
    %96 = vector.shape_cast %95 : vector<8xf32> to vector<8x1xf32>
    %97 = tpu.reciprocal %96 : vector<8x1xf32> -> vector<8x1xf32>
    %98 = vector.broadcast %97 : vector<8x1xf32> to vector<8x8xf32>
    %99 = arith.mulf %94, %98 : vector<8x8xf32>
    %cst_55 = arith.constant dense<0.000000e+00> : vector<8x8xf32>
    %100 = tpu.matmul %99, %86, %cst_55 {dimension_numbers = #tpu.dot_dimension_numbers<[1], [0], [0], [1], [0, 0, 1, 1], [], []>} : vector<8x8xf32>, vector<8x8xf32>, vector<8x8xf32> -> vector<8x8xf32>
    %c0_56 = arith.constant 0 : index
    %c3 = arith.constant 3 : index
    %c0_57 = arith.constant 0 : index
    %c0_58 = arith.constant 0 : index
    %101 = vector.load %arg13[%c0_56, %c3, %c0_57, %c0_58] : memref<1x4x8x8xf32, #tpu.memory_space<vmem>>, vector<1x1x8x8xf32>
    %102 = vector.shape_cast %101 : vector<1x1x8x8xf32> to vector<8x8xf32>
    %103 = vector.shape_cast %99 : vector<8x8xf32> to vector<1x1x8x8xf32>
    tpu.vector_store %arg13[%c0_56, %c3, %c0_57, %c0_58], %103 {strides = array<i32>} : memref<1x4x8x8xf32, #tpu.memory_space<vmem>>, vector<1x1x8x8xf32>,
    %c0_59 = arith.constant 0 : index
    %c24 = arith.constant 24 : index
    %104 = vector.load %arg15[%c0_59, %c24] : memref<8x32xf32, #tpu.memory_space<vmem>>, vector<8x8xf32>
    tpu.vector_store %arg15[%c0_59, %c24], %100 {strides = array<i32>} : memref<8x32xf32, #tpu.memory_space<vmem>>, vector<8x8xf32>,
    %c0_60 = arith.constant 0 : index
    %c0_61 = arith.constant 0 : index
    %105 = vector.load %arg15[%c0_60, %c0_61] : memref<8x32xf32, #tpu.memory_space<vmem>>, vector<8x32xf32>
    %c0_62 = arith.constant 0 : index
    %c0_63 = arith.constant 0 : index
    %c0_64 = arith.constant 0 : index
    %106 = vector.load %arg14[%c0_62, %c0_63, %c0_64] : memref<1x8x32xf32, #tpu.memory_space<vmem>>, vector<1x8x32xf32>
    %107 = vector.shape_cast %106 : vector<1x8x32xf32> to vector<8x32xf32>
    %108 = vector.shape_cast %105 : vector<8x32xf32> to vector<1x8x32xf32>
    tpu.vector_store %arg14[%c0_62, %c0_63, %c0_64], %108 {strides = array<i32>} : memref<1x8x32xf32, #tpu.memory_space<vmem>>, vector<1x8x32xf32>,
    %c0_65 = arith.constant 0 : index
    %c0_66 = arith.constant 0 : index
    %109 = vector.load %arg10[%c0_65, %c0_66] : memref<32x32xf32, #tpu.memory_space<vmem>>, vector<32x32xf32>
    %cst_67 = arith.constant dense<0.000000e+00> : vector<8x32xf32>
    %110 = tpu.matmul %105, %109, %cst_67 {dimension_numbers = #tpu.dot_dimension_numbers<[1], [0], [0], [1], [0, 0, 1, 1], [], []>} : vector<8x32xf32>, vector<32x32xf32>, vector<8x32xf32> -> vector<8x32xf32>
    %c0_68 = arith.constant 0 : index
    %c0_69 = arith.constant 0 : index
    %111 = vector.load %arg11[%c0_68, %c0_69] : memref<1x32xf32, #tpu.memory_space<vmem>>, vector<1x32xf32>
    %112 = vector.broadcast %111 : vector<1x32xf32> to vector<8x32xf32>
    %113 = arith.addf %110, %112 : vector<8x32xf32>
    %c0_70 = arith.constant 0 : index
    %c0_71 = arith.constant 0 : index
    %c0_72 = arith.constant 0 : index
    %114 = vector.load %arg12[%c0_70, %c0_71, %c0_72] : memref<1x8x32xf32, #tpu.memory_space<vmem>>, vector<1x8x32xf32>
    %115 = vector.shape_cast %114 : vector<1x8x32xf32> to vector<8x32xf32>
    %116 = vector.shape_cast %113 : vector<8x32xf32> to vector<1x8x32xf32>
    tpu.vector_store %arg12[%c0_70, %c0_71, %c0_72], %116 {strides = array<i32>} : memref<1x8x32xf32, #tpu.memory_space<vmem>>, vector<1x8x32xf32>,
    return
  }
  func.func @transform_0(%arg0: i32) -> (i32, i32, i32) {
    %c0_i32 = arith.constant 0 : i32
    %c0_i32_0 = arith.constant 0 : i32
    %c0_i32_1 = arith.constant 0 : i32
    return %arg0, %c0_i32, %c0_i32_0 : i32, i32, i32
  }
  func.func @transform_1(%arg0: i32) -> (i32, i32, i32) {
    %c0_i32 = arith.constant 0 : i32
    %c0_i32_0 = arith.constant 0 : i32
    %c0_i32_1 = arith.constant 0 : i32
    return %arg0, %c0_i32, %c0_i32_0 : i32, i32, i32
  }
  func.func @transform_2(%arg0: i32) -> (i32, i32, i32) {
    %c0_i32 = arith.constant 0 : i32
    %c0_i32_0 = arith.constant 0 : i32
    %c0_i32_1 = arith.constant 0 : i32
    return %arg0, %c0_i32, %c0_i32_0 : i32, i32, i32
  }
  func.func @transform_3(%arg0: i32) -> (i32, i32) {
    %c0_i32 = arith.constant 0 : i32
    %c0_i32_0 = arith.constant 0 : i32
    %c0_i32_1 = arith.constant 0 : i32
    return %c0_i32, %c0_i32_0 : i32, i32
  }
  func.func @transform_4(%arg0: i32) -> (i32, i32) {
    %c0_i32 = arith.constant 0 : i32
    %c0_i32_0 = arith.constant 0 : i32
    %c0_i32_1 = arith.constant 0 : i32
    return %c0_i32, %c0_i32_0 : i32, i32
  }
  func.func @transform_5(%arg0: i32) -> (i32, i32) {
    %c0_i32 = arith.constant 0 : i32
    %c0_i32_0 = arith.constant 0 : i32
    %c0_i32_1 = arith.constant 0 : i32
    return %c0_i32, %c0_i32_0 : i32, i32
  }
  func.func @transform_6(%arg0: i32) -> (i32, i32) {
    %c0_i32 = arith.constant 0 : i32
    %c0_i32_0 = arith.constant 0 : i32
    %c0_i32_1 = arith.constant 0 : i32
    return %c0_i32, %c0_i32_0 : i32, i32
  }
  func.func @transform_7(%arg0: i32) -> (i32, i32) {
    %c0_i32 = arith.constant 0 : i32
    %c0_i32_0 = arith.constant 0 : i32
    %c0_i32_1 = arith.constant 0 : i32
    return %c0_i32, %c0_i32_0 : i32, i32
  }
  func.func @transform_8(%arg0: i32) -> (i32, i32) {
    %c0_i32 = arith.constant 0 : i32
    %c0_i32_0 = arith.constant 0 : i32
    %c0_i32_1 = arith.constant 0 : i32
    return %c0_i32, %c0_i32_0 : i32, i32
  }
  func.func @transform_9(%arg0: i32) -> (i32, i32) {
    %c0_i32 = arith.constant 0 : i32
    %c0_i32_0 = arith.constant 0 : i32
    %c0_i32_1 = arith.constant 0 : i32
    return %c0_i32, %c0_i32_0 : i32, i32
  }
  func.func @transform_10(%arg0: i32) -> (i32, i32) {
    %c0_i32 = arith.constant 0 : i32
    %c0_i32_0 = arith.constant 0 : i32
    %c0_i32_1 = arith.constant 0 : i32
    return %c0_i32, %c0_i32_0 : i32, i32
  }
  func.func @transform_11(%arg0: i32) -> (i32, i32, i32) {
    %c0_i32 = arith.constant 0 : i32
    %c0_i32_0 = arith.constant 0 : i32
    %c0_i32_1 = arith.constant 0 : i32
    return %arg0, %c0_i32, %c0_i32_0 : i32, i32, i32
  }
  func.func @transform_12(%arg0: i32) -> (i32, i32, i32, i32) {
    %c0_i32 = arith.constant 0 : i32
    %c0_i32_0 = arith.constant 0 : i32
    %c0_i32_1 = arith.constant 0 : i32
    %c0_i32_2 = arith.constant 0 : i32
    return %arg0, %c0_i32, %c0_i32_0, %c0_i32_1 : i32, i32, i32, i32
  }
  func.func @transform_13(%arg0: i32) -> (i32, i32, i32) {
    %c0_i32 = arith.constant 0 : i32
    %c0_i32_0 = arith.constant 0 : i32
    %c0_i32_1 = arith.constant 0 : i32
    return %arg0, %c0_i32, %c0_i32_0 : i32, i32, i32
  }
}

</mosaic_0001>

<llo_original>
// kernel: tpu_custom_call.1
$region0: #{tpu_custom_call.1}
  #allocation0 [shape = 'u32[]', space=smem, size = 0x4, offset = 0x4, fixed_abs, tag = 'smem constant byte address 0x4 - core index']
  #allocation1 [shape = 'u32[72,128]{1,0:T(1,128)}', space=vmem, size = 0x9000, scoped, tag = 'internal scratch']
  #allocation2 [shape = 'f32[8,32]{1,0:T(8,128)}', space=vmem, size = 0x1000, scoped, tag = 'scratch operand']
  %s0 = inlined_call_operand.hbm [shape: f32[2,8,32], index: 0, kind: input, shape index: {}]
  %s1 = inlined_call_operand.hbm [shape: f32[2,8,32], index: 1, kind: input, shape index: {}]
  %s2 = inlined_call_operand.hbm [shape: f32[2,8,32], index: 2, kind: input, shape index: {}]
  %s3 = inlined_call_operand.hbm [shape: f32[32,32], index: 3, kind: input, shape index: {}]
  %s4 = inlined_call_operand.hbm [shape: f32[32,32], index: 4, kind: input, shape index: {}]
  %s5 = inlined_call_operand.hbm [shape: f32[32,32], index: 5, kind: input, shape index: {}]
  %s6 = inlined_call_operand.vmem [shape: f32[1,32], index: 6, kind: input, shape index: {}]
  %s7 = inlined_call_operand.vmem [shape: f32[1,32], index: 7, kind: input, shape index: {}]
  %s8 = inlined_call_operand.vmem [shape: f32[1,32], index: 8, kind: input, shape index: {}]
  %s9 = inlined_call_operand.hbm [shape: f32[32,32], index: 9, kind: input, shape index: {}]
  %s10 = inlined_call_operand.vmem [shape: f32[1,32], index: 10, kind: input, shape index: {}]
  %s11 = inlined_call_operand.hbm [shape: f32[2,8,32], index: 11, kind: output, shape index: {0}]
  %s12 = inlined_call_operand.hbm [shape: f32[2,4,8,8], index: 12, kind: output, shape index: {1}]
  %s13 = inlined_call_operand.hbm [shape: f32[2,8,32], index: 13, kind: output, shape index: {2}]
  %14 = xla_tuple %s11, %s12, %s13
  %s15 = sld [smem:[#allocation0]]
  $region121: #{tpu_custom_call.1} parent=0
    _
  %s17 = ssub.s32 1, %s15
  %s18 = scalar_select 0, %s17, %s15
  $region1: #{tpu_custom_call.1} parent=0
    #allocation3 [shape = 'u8[8192]{0}', space=vmem, size = 0x2000, scoped, tag = 'input window, operand 0']
    #allocation4 [shape = 's32[2]{0}', space=sflag, size = 0x8, scoped, tag = 'scoped memory for tpu_custom_call.1']
    #allocation5 [shape = 's32[2]{0}', space=sflag, size = 0x8, scoped, tag = 'scoped memory for tpu_custom_call.1']
    #allocation6 [shape = 'u8[8192]{0}', space=vmem, size = 0x2000, scoped, tag = 'input window, operand 1']
    #allocation7 [shape = 's32[2]{0}', space=sflag, size = 0x8, scoped, tag = 'scoped memory for tpu_custom_call.1']
    #allocation8 [shape = 'u8[8192]{0}', space=vmem, size = 0x2000, scoped, tag = 'input window, operand 2']
    #allocation9 [shape = 'u8[16384]{0}', space=vmem, size = 0x4000, scoped, tag = 'input window, operand 3, single buffered']
    #allocation10 [shape = 's32[1]{0}', space=sflag, size = 0x4, scoped, tag = 'scoped memory for tpu_custom_call.1']
    #allocation11 [shape = 'u8[16384]{0}', space=vmem, size = 0x4000, scoped, tag = 'input window, operand 4, single buffered']
    #allocation12 [shape = 'u8[16384]{0}', space=vmem, size = 0x4000, scoped, tag = 'input window, operand 5, single buffered']
    #allocation13 [shape = 's32[1]{0}', space=sflag, size = 0x4, scoped, tag = 'scoped memory for tpu_custom_call.1']
    #allocation14 [shape = 'u8[16384]{0}', space=vmem, size = 0x4000, scoped, tag = 'input window, operand 9, single buffered']
    #allocation15 [shape = 'u8[8192]{0}', space=vmem, size = 0x2000, scoped, tag = 'output window, operand 0']
    #allocation16 [shape = 'u8[32768]{0}', space=vmem, size = 0x8000, scoped, tag = 'output window, operand 1']
    #allocation17 [shape = 's32[2]{0}', space=sflag, size = 0x8, scoped, tag = 'scoped memory for tpu_custom_call.1']
    #allocation18 [shape = 'u8[8192]{0}', space=vmem, size = 0x2000, scoped, tag = 'output window, operand 2']
    %19 = vsyncpa [#allocation4], 0
    %s20 = scalar_lea.sflag [#allocation4], 1
    %21 = vsyncpa %s20, 0
    %22 = vsyncpa [#allocation7], 0
    %s23 = scalar_lea.sflag [#allocation7], 1
    %24 = vsyncpa %s23, 0
    %25 = vsyncpa [#allocation10], 0
    %26 = vsyncpa [#allocation13], 0
    %27 = vsyncpa [#allocation5], 0
    %s28 = scalar_lea.sflag [#allocation5], 1
    %29 = vsyncpa %s28, 0
    %30 = vsyncpa [#allocation17], 0
    %s31 = scalar_lea.sflag [#allocation17], 1
    %32 = vsyncpa %s31, 0
    loop: start=0, step=1, limit=4
    $region2: #{tpu_custom_call.1} parent=1 // loop_pre_header
      _
    $region3: #{tpu_custom_call.1} parent=1 // loop_header
      %s34 = sphi 0, %s38
      %p35 = scmp.ge.s32.totalorder %s34, 4
      %s44 = sphi 0, %s46
      %s47 = sphi 0, %s44
      %s48 = sphi 0, %s47
      %s64 = sphi 0, %s48
      %s70 = sphi 0, %s72
      %s73 = sphi 0, %s70
      %s74 = sphi 0, %s73
      %s90 = sphi 0, %s74
      %s96 = sphi 0, %s98
      %s99 = sphi 0, %s96
      %s100 = sphi 0, %s99
      %s116 = sphi 0, %s100
      %s120 = sphi 0, %s120
      %s122 = sphi 0, %s120
      %s123 = sphi 0, %s122
      %s137 = sphi 0, %s123
      %s141 = sphi 0, %s141
      %s143 = sphi 0, %s141
      %s144 = sphi 0, %s143
      %s158 = sphi 0, %s144
      %s162 = sphi 0, %s162
      %s164 = sphi 0, %s162
      %s165 = sphi 0, %s164
      %s179 = sphi 0, %s165
      %s183 = sphi 0, %s183
      %s185 = sphi 0, %s183
      %s186 = sphi 0, %s185
      %s200 = sphi 0, %s186
      %s204 = sphi 0, %s204
      %s206 = sphi 0, %s204
      %s207 = sphi 0, %s206
      %s221 = sphi 0, %s207
      %s225 = sphi 0, %s225
      %s227 = sphi 0, %s225
      %s228 = sphi 0, %s227
      %s242 = sphi 0, %s228
      %s246 = sphi 0, %s246
      %s248 = sphi 0, %s246
      %s249 = sphi 0, %s248
      %s263 = sphi 0, %s249
      %s267 = sphi 0, %s267
      %s269 = sphi 0, %s267
      %s270 = sphi 0, %s269
      %s284 = sphi 0, %s270
      %s290 = sphi 0, %s292
      %s293 = sphi 0, %s290
      %s294 = sphi 0, %s293
      %s310 = sphi 0, %s294
      %s316 = sphi 0, %s318
      %s319 = sphi 0, %s316
      %s320 = sphi 0, %s319
      %s336 = sphi 0, %s320
      %s342 = sphi 0, %s344
      %s345 = sphi 0, %s342
      %s346 = sphi 0, %s345
      %s362 = sphi 0, %s346
    $region4: #{tpu_custom_call.1} parent=1 // loop_header_branch
      %37 = sbr.rel (%p35) target = $region8
    $region5: #{tpu_custom_call.1} parent=1 // loop_body
      %s39 = ssub.s32 %s34, 1
      %s40 = ssub.s32 %s34, 2
      %s41 = sadd.s32 %s34, 1
      %s42 = ssub.s32 %s34, %s41
      %p43 = scmp.eq.s32.totalorder %s42, 0
      %s45 = sadd.s32 %s44, 1
      %s46 = scalar_select %p43, %s44, %s45
      %p49 = pneg %p43
      %p50 = scmp.eq.s32.totalorder %s34, 1
      %p51 = por %p49, %p50
      %p52 = scmp.ne.s32.totalorder %s44, %s47
      %p53 = scmp.eq.s32.totalorder %s34, 0
      %p54 = por %p52, %p53
      %p55 = scmp.ne.s32.totalorder %s44, %s47
      %p56 = scmp.eq.s32.totalorder %s39, 1
      %p57 = por %p55, %p56
      %p58 = scmp.ne.s32.totalorder %s47, %s48
      %p59 = scmp.eq.s32.totalorder %s39, 0
      %p60 = por %p58, %p59
      %p61 = scmp.ne.s32.totalorder %s47, %s48
      %p62 = scmp.eq.s32.totalorder %s40, 1
      %p63 = por %p61, %p62
      %p65 = scmp.ne.s32.totalorder %s48, %s64
      %p66 = scmp.eq.s32.totalorder %s40, 0
      %p67 = por %p65, %p66
      %s68 = ssub.s32 %s34, %s41
      %p69 = scmp.eq.s32.totalorder %s68, 0
      %s71 = sadd.s32 %s70, 1
      %s72 = scalar_select %p69, %s70, %s71
      %p75 = pneg %p69
      %p76 = scmp.eq.s32.totalorder %s34, 1
      %p77 = por %p75, %p76
      %p78 = scmp.ne.s32.totalorder %s70, %s73
      %p79 = scmp.eq.s32.totalorder %s34, 0
      %p80 = por %p78, %p79
      %p81 = scmp.ne.s32.totalorder %s70, %s73
      %p82 = scmp.eq.s32.totalorder %s39, 1
      %p83 = por %p81, %p82
      %p84 = scmp.ne.s32.totalorder %s73, %s74
      %p85 = scmp.eq.s32.totalorder %s39, 0
      %p86 = por %p84, %p85
      %p87 = scmp.ne.s32.totalorder %s73, %s74
      %p88 = scmp.eq.s32.totalorder %s40, 1
      %p89 = por %p87, %p88
      %p91 = scmp.ne.s32.totalorder %s74, %s90
      %p92 = scmp.eq.s32.totalorder %s40, 0
      %p93 = por %p91, %p92
      %s94 = ssub.s32 %s34, %s41
      %p95 = scmp.eq.s32.totalorder %s94, 0
      %s97 = sadd.s32 %s96, 1
      %s98 = scalar_select %p95, %s96, %s97
      %p101 = pneg %p95
      %p102 = scmp.eq.s32.totalorder %s34, 1
      %p103 = por %p101, %p102
      %p104 = scmp.ne.s32.totalorder %s96, %s99
      %p105 = scmp.eq.s32.totalorder %s34, 0
      %p106 = por %p104, %p105
      %p107 = scmp.ne.s32.totalorder %s96, %s99
      %p108 = scmp.eq.s32.totalorder %s39, 1
      %p109 = por %p107, %p108
      %p110 = scmp.ne.s32.totalorder %s99, %s100
      %p111 = scmp.eq.s32.totalorder %s39, 0
      %p112 = por %p110, %p111
      %p113 = scmp.ne.s32.totalorder %s99, %s100
      %p114 = scmp.eq.s32.totalorder %s40, 1
      %p115 = por %p113, %p114
      %p117 = scmp.ne.s32.totalorder %s100, %s116
      %p118 = scmp.eq.s32.totalorder %s40, 0
      %p119 = por %p117, %p118
      %s121 = sadd.s32 %s120, 1
      %p124 = scmp.eq.s32.totalorder %s34, 1
      %p125 = scmp.ne.s32.totalorder %s120, %s122
      %p126 = scmp.eq.s32.totalorder %s34, 0
      %p127 = por %p125, %p126
      %p128 = scmp.ne.s32.totalorder %s120, %s122
      %p129 = scmp.eq.s32.totalorder %s39, 1
      %p130 = por %p128, %p129
      %p131 = scmp.ne.s32.totalorder %s122, %s123
      %p132 = scmp.eq.s32.totalorder %s39, 0
      %p133 = por %p131, %p132
      %p134 = scmp.ne.s32.totalorder %s122, %s123
      %p135 = scmp.eq.s32.totalorder %s40, 1
      %p136 = por %p134, %p135
      %p138 = scmp.ne.s32.totalorder %s123, %s137
      %p139 = scmp.eq.s32.totalorder %s40, 0
      %p140 = por %p138, %p139
      %s142 = sadd.s32 %s141, 1
      %p145 = scmp.eq.s32.totalorder %s34, 1
      %p146 = scmp.ne.s32.totalorder %s141, %s143
      %p147 = scmp.eq.s32.totalorder %s34, 0
      %p148 = por %p146, %p147
      %p149 = scmp.ne.s32.totalorder %s141, %s143
      %p150 = scmp.eq.s32.totalorder %s39, 1
      %p151 = por %p149, %p150
      %p152 = scmp.ne.s32.totalorder %s143, %s144
      %p153 = scmp.eq.s32.totalorder %s39, 0
      %p154 = por %p152, %p153
      %p155 = scmp.ne.s32.totalorder %s143, %s144
      %p156 = scmp.eq.s32.totalorder %s40, 1
      %p157 = por %p155, %p156
      %p159 = scmp.ne.s32.totalorder %s144, %s158
      %p160 = scmp.eq.s32.totalorder %s40, 0
      %p161 = por %p159, %p160
      %s163 = sadd.s32 %s162, 1
      %p166 = scmp.eq.s32.totalorder %s34, 1
      %p167 = scmp.ne.s32.totalorder %s162, %s164
      %p168 = scmp.eq.s32.totalorder %s34, 0
      %p169 = por %p167, %p168
      %p170 = scmp.ne.s32.totalorder %s162, %s164
      %p171 = scmp.eq.s32.totalorder %s39, 1
      %p172 = por %p170, %p171
      %p173 = scmp.ne.s32.totalorder %s164, %s165
      %p174 = scmp.eq.s32.totalorder %s39, 0
      %p175 = por %p173, %p174
      %p176 = scmp.ne.s32.totalorder %s164, %s165
      %p177 = scmp.eq.s32.totalorder %s40, 1
      %p178 = por %p176, %p177
      %p180 = scmp.ne.s32.totalorder %s165, %s179
      %p181 = scmp.eq.s32.totalorder %s40, 0
      %p182 = por %p180, %p181
      %s184 = sadd.s32 %s183, 1
      %p187 = scmp.eq.s32.totalorder %s34, 1
      %p188 = scmp.ne.s32.totalorder %s183, %s185
      %p189 = scmp.eq.s32.totalorder %s34, 0
      %p190 = por %p188, %p189
      %p191 = scmp.ne.s32.totalorder %s183, %s185
      %p192 = scmp.eq.s32.totalorder %s39, 1
      %p193 = por %p191, %p192
      %p194 = scmp.ne.s32.totalorder %s185, %s186
      %p195 = scmp.eq.s32.totalorder %s39, 0
      %p196 = por %p194, %p195
      %p197 = scmp.ne.s32.totalorder %s185, %s186
      %p198 = scmp.eq.s32.totalorder %s40, 1
      %p199 = por %p197, %p198
      %p201 = scmp.ne.s32.totalorder %s186, %s200
      %p202 = scmp.eq.s32.totalorder %s40, 0
      %p203 = por %p201, %p202
      %s205 = sadd.s32 %s204, 1
      %p208 = scmp.eq.s32.totalorder %s34, 1
      %p209 = scmp.ne.s32.totalorder %s204, %s206
      %p210 = scmp.eq.s32.totalorder %s34, 0
      %p211 = por %p209, %p210
      %p212 = scmp.ne.s32.totalorder %s204, %s206
      %p213 = scmp.eq.s32.totalorder %s39, 1
      %p214 = por %p212, %p213
      %p215 = scmp.ne.s32.totalorder %s206, %s207
      %p216 = scmp.eq.s32.totalorder %s39, 0
      %p217 = por %p215, %p216
      %p218 = scmp.ne.s32.totalorder %s206, %s207
      %p219 = scmp.eq.s32.totalorder %s40, 1
      %p220 = por %p218, %p219
      %p222 = scmp.ne.s32.totalorder %s207, %s221
      %p223 = scmp.eq.s32.totalorder %s40, 0
      %p224 = por %p222, %p223
      %s226 = sadd.s32 %s225, 1
      %p229 = scmp.eq.s32.totalorder %s34, 1
      %p230 = scmp.ne.s32.totalorder %s225, %s227
      %p231 = scmp.eq.s32.totalorder %s34, 0
      %p232 = por %p230, %p231
      %p233 = scmp.ne.s32.totalorder %s225, %s227
      %p234 = scmp.eq.s32.totalorder %s39, 1
      %p235 = por %p233, %p234
      %p236 = scmp.ne.s32.totalorder %s227, %s228
      %p237 = scmp.eq.s32.totalorder %s39, 0
      %p238 = por %p236, %p237
      %p239 = scmp.ne.s32.totalorder %s227, %s228
      %p240 = scmp.eq.s32.totalorder %s40, 1
      %p241 = por %p239, %p240
      %p243 = scmp.ne.s32.totalorder %s228, %s242
      %p244 = scmp.eq.s32.totalorder %s40, 0
      %p245 = por %p243, %p244
      %s247 = sadd.s32 %s246, 1
      %p250 = scmp.eq.s32.totalorder %s34, 1
      %p251 = scmp.ne.s32.totalorder %s246, %s248
      %p252 = scmp.eq.s32.totalorder %s34, 0
      %p253 = por %p251, %p252
      %p254 = scmp.ne.s32.totalorder %s246, %s248
      %p255 = scmp.eq.s32.totalorder %s39, 1
      %p256 = por %p254, %p255
      %p257 = scmp.ne.s32.totalorder %s248, %s249
      %p258 = scmp.eq.s32.totalorder %s39, 0
      %p259 = por %p257, %p258
      %p260 = scmp.ne.s32.totalorder %s248, %s249
      %p261 = scmp.eq.s32.totalorder %s40, 1
      %p262 = por %p260, %p261
      %p264 = scmp.ne.s32.totalorder %s249, %s263
      %p265 = scmp.eq.s32.totalorder %s40, 0
      %p266 = por %p264, %p265
      %s268 = sadd.s32 %s267, 1
      %p271 = scmp.eq.s32.totalorder %s34, 1
      %p272 = scmp.ne.s32.totalorder %s267, %s269
      %p273 = scmp.eq.s32.totalorder %s34, 0
      %p274 = por %p272, %p273
      %p275 = scmp.ne.s32.totalorder %s267, %s269
      %p276 = scmp.eq.s32.totalorder %s39, 1
      %p277 = por %p275, %p276
      %p278 = scmp.ne.s32.totalorder %s269, %s270
      %p279 = scmp.eq.s32.totalorder %s39, 0
      %p280 = por %p278, %p279
      %p281 = scmp.ne.s32.totalorder %s269, %s270
      %p282 = scmp.eq.s32.totalorder %s40, 1
      %p283 = por %p281, %p282
      %p285 = scmp.ne.s32.totalorder %s270, %s284
      %p286 = scmp.eq.s32.totalorder %s40, 0
      %p287 = por %p285, %p286
      %s288 = ssub.s32 %s34, %s41
      %p289 = scmp.eq.s32.totalorder %s288, 0
      %s291 = sadd.s32 %s290, 1
      %s292 = scalar_select %p289, %s290, %s291
      %p295 = pneg %p289
      %p296 = scmp.eq.s32.totalorder %s34, 1
      %p297 = por %p295, %p296
      %p298 = scmp.ne.s32.totalorder %s290, %s293
      %p299 = scmp.eq.s32.totalorder %s34, 0
      %p300 = por %p298, %p299
      %p301 = scmp.ne.s32.totalorder %s290, %s293
      %p302 = scmp.eq.s32.totalorder %s39, 1
      %p303 = por %p301, %p302
      %p304 = scmp.ne.s32.totalorder %s293, %s294
      %p305 = scmp.eq.s32.totalorder %s39, 0
      %p306 = por %p304, %p305
      %p307 = scmp.ne.s32.totalorder %s293, %s294
      %p308 = scmp.eq.s32.totalorder %s40, 1
      %p309 = por %p307, %p308
      %p311 = scmp.ne.s32.totalorder %s294, %s310
      %p312 = scmp.eq.s32.totalorder %s40, 0
      %p313 = por %p311, %p312
      %s314 = ssub.s32 %s34, %s41
      %p315 = scmp.eq.s32.totalorder %s314, 0
      %s317 = sadd.s32 %s316, 1
      %s318 = scalar_select %p315, %s316, %s317
      %p321 = pneg %p315
      %p322 = scmp.eq.s32.totalorder %s34, 1
      %p323 = por %p321, %p322
      %p324 = scmp.ne.s32.totalorder %s316, %s319
      %p325 = scmp.eq.s32.totalorder %s34, 0
      %p326 = por %p324, %p325
      %p327 = scmp.ne.s32.totalorder %s316, %s319
      %p328 = scmp.eq.s32.totalorder %s39, 1
      %p329 = por %p327, %p328
      %p330 = scmp.ne.s32.totalorder %s319, %s320
      %p331 = scmp.eq.s32.totalorder %s39, 0
      %p332 = por %p330, %p331
      %p333 = scmp.ne.s32.totalorder %s319, %s320
      %p334 = scmp.eq.s32.totalorder %s40, 1
      %p335 = por %p333, %p334
      %p337 = scmp.ne.s32.totalorder %s320, %s336
      %p338 = scmp.eq.s32.totalorder %s40, 0
      %p339 = por %p337, %p338
      %s340 = ssub.s32 %s34, %s41
      %p341 = scmp.eq.s32.totalorder %s340, 0
      %s343 = sadd.s32 %s342, 1
      %s344 = scalar_select %p341, %s342, %s343
      %p347 = pneg %p341
      %p348 = scmp.eq.s32.totalorder %s34, 1
      %p349 = por %p347, %p348
      %p350 = scmp.ne.s32.totalorder %s342, %s345
      %p351 = scmp.eq.s32.totalorder %s34, 0
      %p352 = por %p350, %p351
      %p353 = scmp.ne.s32.totalorder %s342, %s345
      %p354 = scmp.eq.s32.totalorder %s39, 1
      %p355 = por %p353, %p354
      %p356 = scmp.ne.s32.totalorder %s345, %s346
      %p357 = scmp.eq.s32.totalorder %s39, 0
      %p358 = por %p356, %p357
      %p359 = scmp.ne.s32.totalorder %s345, %s346
      %p360 = scmp.eq.s32.totalorder %s40, 1
      %p361 = por %p359, %p360
      %p363 = scmp.ne.s32.totalorder %s346, %s362
      %p364 = scmp.eq.s32.totalorder %s40, 0
      %p365 = por %p363, %p364
      %p366 = scmp.le.s32.totalorder 1, %s34
      %p367 = scmp.lt.s32.totalorder %s34, 3
      %p368 = pnand %p366, %p367
      %p369 = pneg %p368
      // Predicated region
      $region9: #{tpu_custom_call.1} parent=5 // pred_check
        _
      $region10: #{tpu_custom_call.1} parent=5 // pred_check_branch
        %371 = sbr.rel (%p368) target = $region12
      $region11: #{tpu_custom_call.1} parent=5 // pred_region
        %s372 = ssub.s32 %s34, 1
        // Predicated region
        $region13: #{tpu_custom_call.1} parent=11 // pred_check
          %p373 = pneg %p133
        $region14: #{tpu_custom_call.1} parent=11 // pred_check_branch
          %375 = sbr.rel (%p373) target = $region16
        $region15: #{tpu_custom_call.1} parent=11 // pred_region
          %377 = vsyncadd [#allocation10], 0
          %s378 = sshll.u32 %s3, 4
          %s379 = int_to_ptr.hbm [resolvable:$true] %s378
          %s380 = sshll.u32 [#allocation9], 4
          %s381 = int_to_ptr.vmem [resolvable:$true] %s380
          %386 = dma.hbm_to_vmem [thread:$0]  %s379, 512, %s381, [#allocation10], 128, 128, 8
        $region16: #{tpu_custom_call.1} parent=11 // pred_fallthru
          _
        // Predicated region
        $region17: #{tpu_custom_call.1} parent=11 // pred_check
          %p387 = pneg %p154
        $region18: #{tpu_custom_call.1} parent=11 // pred_check_branch
          %389 = sbr.rel (%p387) target = $region20
        $region19: #{tpu_custom_call.1} parent=11 // pred_region
          %391 = vsyncadd [#allocation10], 0
          %s392 = sshll.u32 %s4, 4
          %s393 = int_to_ptr.hbm [resolvable:$true] %s392
          %s394 = sshll.u32 [#allocation11], 4
          %s395 = int_to_ptr.vmem [resolvable:$true] %s394
          %400 = dma.hbm_to_vmem [thread:$0]  %s393, 512, %s395, [#allocation10], 128, 128, 8
        $region20: #{tpu_custom_call.1} parent=11 // pred_fallthru
          _
        // Predicated region
        $region21: #{tpu_custom_call.1} parent=11 // pred_check
          %p401 = pneg %p175
        $region22: #{tpu_custom_call.1} parent=11 // pred_check_branch
          %403 = sbr.rel (%p401) target = $region24
        $region23: #{tpu_custom_call.1} parent=11 // pred_region
          %405 = vsyncadd [#allocation13], 0
          %s406 = sshll.u32 %s5, 4
          %s407 = int_to_ptr.hbm [resolvable:$true] %s406
          %s408 = sshll.u32 [#allocation12], 4
          %s409 = int_to_ptr.vmem [resolvable:$true] %s408
          %414 = dma.hbm_to_vmem [thread:$0]  %s407, 512, %s409, [#allocation13], 128, 128, 8
        $region24: #{tpu_custom_call.1} parent=11 // pred_fallthru
          _
        // Predicated region
        $region25: #{tpu_custom_call.1} parent=11 // pred_check
          %p415 = pneg %p196
        $region26: #{tpu_custom_call.1} parent=11 // pred_check_branch
          %417 = sbr.rel (%p415) target = $region28
        $region27: #{tpu_custom_call.1} parent=11 // pred_region
          _
        $region28: #{tpu_custom_call.1} parent=11 // pred_fallthru
          _
        // Predicated region
        $region29: #{tpu_custom_call.1} parent=11 // pred_check
          %p418 = pneg %p217
        $region30: #{tpu_custom_call.1} parent=11 // pred_check_branch
          %420 = sbr.rel (%p418) target = $region32
        $region31: #{tpu_custom_call.1} parent=11 // pred_region
          _
        $region32: #{tpu_custom_call.1} parent=11 // pred_fallthru
          _
        // Predicated region
        $region33: #{tpu_custom_call.1} parent=11 // pred_check
          %p421 = pneg %p238
        $region34: #{tpu_custom_call.1} parent=11 // pred_check_branch
          %423 = sbr.rel (%p421) target = $region36
        $region35: #{tpu_custom_call.1} parent=11 // pred_region
          _
        $region36: #{tpu_custom_call.1} parent=11 // pred_fallthru
          _
        // Predicated region
        $region37: #{tpu_custom_call.1} parent=11 // pred_check
          %p424 = pneg %p259
        $region38: #{tpu_custom_call.1} parent=11 // pred_check_branch
          %426 = sbr.rel (%p424) target = $region40
        $region39: #{tpu_custom_call.1} parent=11 // pred_region
          %428 = vsyncadd [#allocation13], 0
          %s429 = sshll.u32 %s9, 4
          %s430 = int_to_ptr.hbm [resolvable:$true] %s429
          %s431 = sshll.u32 [#allocation14], 4
          %s432 = int_to_ptr.vmem [resolvable:$true] %s431
          %437 = dma.hbm_to_vmem [thread:$0]  %s430, 512, %s432, [#allocation13], 128, 128, 8
        $region40: #{tpu_custom_call.1} parent=11 // pred_fallthru
          _
        // Predicated region
        $region41: #{tpu_custom_call.1} parent=11 // pred_check
          %p438 = pneg %p280
        $region42: #{tpu_custom_call.1} parent=11 // pred_check_branch
          %440 = sbr.rel (%p438) target = $region44
        $region43: #{tpu_custom_call.1} parent=11 // pred_region
          _
        $region44: #{tpu_custom_call.1} parent=11 // pred_fallthru
          _
      $region12: #{tpu_custom_call.1} parent=5 // pred_fallthru
        _
      %p441 = scmp.lt.s32.totalorder %s34, 2
      // Predicated region
      $region45: #{tpu_custom_call.1} parent=5 // pred_check
        %p442 = pneg %p441
      $region46: #{tpu_custom_call.1} parent=5 // pred_check_branch
        %444 = sbr.rel (%p442) target = $region48
      $region47: #{tpu_custom_call.1} parent=5 // pred_region
        // Predicated region
        $region49: #{tpu_custom_call.1} parent=47 // pred_check
          %p445 = pneg %p54
        $region50: #{tpu_custom_call.1} parent=47 // pred_check_branch
          %447 = sbr.rel (%p445) target = $region52
        $region51: #{tpu_custom_call.1} parent=47 // pred_region
          %s448 = sand.u32 %s44, 1
          %s449 = scalar_lea.sflag [#allocation4], %s448
          %s450 = sand.u32 %s44, 1
          %s451 = smul.addr %s450, 8
          %s452 = scalar_lea.vmem [#allocation3], %s451
          %454 = vsyncadd %s449, 0
          %s455 = smul.addr %s34, 8
          %s456 = scalar_lea.hbm %s0, %s455
          %s458 = sshll.u32 %s456, 4
          %s459 = int_to_ptr.hbm [resolvable:$true] %s458
          %s460 = sshll.u32 %s452, 4
          %s461 = int_to_ptr.vmem [resolvable:$true] %s460
          %463 = dma.hbm_to_vmem [thread:$0]  %s459, 128, %s461, %s449
        $region52: #{tpu_custom_call.1} parent=47 // pred_fallthru
          _
        // Predicated region
        $region53: #{tpu_custom_call.1} parent=47 // pred_check
          %p464 = pneg %p80
        $region54: #{tpu_custom_call.1} parent=47 // pred_check_branch
          %466 = sbr.rel (%p464) target = $region56
        $region55: #{tpu_custom_call.1} parent=47 // pred_region
          %s467 = sand.u32 %s34, 1
          %s468 = scalar_lea.sflag [#allocation7], %s467
          %s469 = sand.u32 %s70, 1
          %s470 = smul.addr %s469, 8
          %s471 = scalar_lea.vmem [#allocation6], %s470
          %473 = vsyncadd %s468, 0
          %s474 = smul.addr %s34, 8
          %s475 = scalar_lea.hbm %s1, %s474
          %s477 = sshll.u32 %s475, 4
          %s478 = int_to_ptr.hbm [resolvable:$true] %s477
          %s479 = sshll.u32 %s471, 4
          %s480 = int_to_ptr.vmem [resolvable:$true] %s479
          %482 = dma.hbm_to_vmem [thread:$0]  %s478, 128, %s480, %s468
        $region56: #{tpu_custom_call.1} parent=47 // pred_fallthru
          _
        // Predicated region
        $region57: #{tpu_custom_call.1} parent=47 // pred_check
          %p483 = pneg %p106
        $region58: #{tpu_custom_call.1} parent=47 // pred_check_branch
          %485 = sbr.rel (%p483) target = $region60
        $region59: #{tpu_custom_call.1} parent=47 // pred_region
          %s486 = sand.u32 %s34, 1
          %s487 = scalar_lea.sflag [#allocation7], %s486
          %s488 = sand.u32 %s96, 1
          %s489 = smul.addr %s488, 8
          %s490 = scalar_lea.vmem [#allocation8], %s489
          %492 = vsyncadd %s487, 0
          %s493 = smul.addr %s34, 8
          %s494 = scalar_lea.hbm %s2, %s493
          %s496 = sshll.u32 %s494, 4
          %s497 = int_to_ptr.hbm [resolvable:$true] %s496
          %s498 = sshll.u32 %s490, 4
          %s499 = int_to_ptr.vmem [resolvable:$true] %s498
          %501 = dma.hbm_to_vmem [thread:$0]  %s497, 128, %s499, %s487
        $region60: #{tpu_custom_call.1} parent=47 // pred_fallthru
          _
      $region48: #{tpu_custom_call.1} parent=5 // pred_fallthru
        _
      %p502 = scmp.le.s32.totalorder 1, %s34
      %p503 = scmp.lt.s32.totalorder %s34, 3
      %p504 = pnand %p502, %p503
      %p505 = pneg %p504
      // Predicated region
      $region61: #{tpu_custom_call.1} parent=5 // pred_check
        _
      $region62: #{tpu_custom_call.1} parent=5 // pred_check_branch
        %507 = sbr.rel (%p504) target = $region64
      $region63: #{tpu_custom_call.1} parent=5 // pred_region
        %s508 = ssub.s32 %s34, 1
        %s509 = sand.u32 %s47, 1
        %s510 = scalar_lea.sflag [#allocation4], %s509
        %s511 = sand.u32 %s47, 1
        %s512 = smul.addr %s511, 8
        %s513 = scalar_lea.vmem [#allocation3], %s512
        // Predicated region
        $region65: #{tpu_custom_call.1} parent=63 // pred_check
          %p514 = pneg %p60
        $region66: #{tpu_custom_call.1} parent=63 // pred_check_branch
          %516 = sbr.rel (%p514) target = $region68
        $region67: #{tpu_custom_call.1} parent=63 // pred_region
          %518 = dma.done %s510, 128
        $region68: #{tpu_custom_call.1} parent=63 // pred_fallthru
          _
        %s519 = sand.u32 %s39, 1
        %s520 = scalar_lea.sflag [#allocation7], %s519
        %s521 = sand.u32 %s73, 1
        %s522 = smul.addr %s521, 8
        %s523 = scalar_lea.vmem [#allocation6], %s522
        // Predicated region
        $region69: #{tpu_custom_call.1} parent=63 // pred_check
          %p524 = pneg %p86
        $region70: #{tpu_custom_call.1} parent=63 // pred_check_branch
          %526 = sbr.rel (%p524) target = $region72
        $region71: #{tpu_custom_call.1} parent=63 // pred_region
          %528 = dma.done %s520, 128
        $region72: #{tpu_custom_call.1} parent=63 // pred_fallthru
          _
        %s529 = sand.u32 %s39, 1
        %s530 = scalar_lea.sflag [#allocation7], %s529
        %s531 = sand.u32 %s99, 1
        %s532 = smul.addr %s531, 8
        %s533 = scalar_lea.vmem [#allocation8], %s532
        // Predicated region
        $region73: #{tpu_custom_call.1} parent=63 // pred_check
          %p534 = pneg %p112
        $region74: #{tpu_custom_call.1} parent=63 // pred_check_branch
          %536 = sbr.rel (%p534) target = $region76
        $region75: #{tpu_custom_call.1} parent=63 // pred_region
          %538 = dma.done %s530, 128
        $region76: #{tpu_custom_call.1} parent=63 // pred_fallthru
          _
        // Predicated region
        $region77: #{tpu_custom_call.1} parent=63 // pred_check
          %p539 = pneg %p133
        $region78: #{tpu_custom_call.1} parent=63 // pred_check_branch
          %541 = sbr.rel (%p539) target = $region80
        $region79: #{tpu_custom_call.1} parent=63 // pred_region
          %543 = dma.done [#allocation10], 512
        $region80: #{tpu_custom_call.1} parent=63 // pred_fallthru
          _
        // Predicated region
        $region81: #{tpu_custom_call.1} parent=63 // pred_check
          %p544 = pneg %p154
        $region82: #{tpu_custom_call.1} parent=63 // pred_check_branch
          %546 = sbr.rel (%p544) target = $region84
        $region83: #{tpu_custom_call.1} parent=63 // pred_region
          %548 = dma.done [#allocation10], 512
        $region84: #{tpu_custom_call.1} parent=63 // pred_fallthru
          _
        // Predicated region
        $region85: #{tpu_custom_call.1} parent=63 // pred_check
          %p549 = pneg %p175
        $region86: #{tpu_custom_call.1} parent=63 // pred_check_branch
          %551 = sbr.rel (%p549) target = $region88
        $region87: #{tpu_custom_call.1} parent=63 // pred_region
          %553 = dma.done [#allocation13], 512
        $region88: #{tpu_custom_call.1} parent=63 // pred_fallthru
          _
        // Predicated region
        $region89: #{tpu_custom_call.1} parent=63 // pred_check
          %p554 = pneg %p259
        $region90: #{tpu_custom_call.1} parent=63 // pred_check_branch
          %556 = sbr.rel (%p554) target = $region92
        $region91: #{tpu_custom_call.1} parent=63 // pred_region
          %558 = dma.done [#allocation13], 512
        $region92: #{tpu_custom_call.1} parent=63 // pred_fallthru
          _
        %s559 = sand.u32 %s47, 1
        %s560 = scalar_lea.sflag [#allocation4], %s559
        %s561 = sand.u32 %s47, 1
        %s562 = smul.addr %s561, 8
        %s563 = scalar_lea.vmem [#allocation3], %s562
        %p564 = pneg %p60
        %p565 = pneg %p57
        %s566 = sand.u32 %s39, 1
        %s567 = scalar_lea.sflag [#allocation7], %s566
        %s568 = sand.u32 %s73, 1
        %s569 = smul.addr %s568, 8
        %s570 = scalar_lea.vmem [#allocation6], %s569
        %p571 = pneg %p86
        %p572 = pneg %p83
        %s573 = sand.u32 %s39, 1
        %s574 = scalar_lea.sflag [#allocation7], %s573
        %s575 = sand.u32 %s99, 1
        %s576 = smul.addr %s575, 8
        %s577 = scalar_lea.vmem [#allocation8], %s576
        %p578 = pneg %p112
        %p579 = pneg %p109
        %p580 = pneg %p133
        %p581 = pneg %p130
        %p582 = pneg %p154
        %p583 = pneg %p151
        %p584 = pneg %p175
        %p585 = pneg %p172
        %p586 = pneg %p196
        %p587 = pneg %p193
        %p588 = pneg %p217
        %p589 = pneg %p214
        %p590 = pneg %p238
        %p591 = pneg %p235
        %p592 = pneg %p259
        %p593 = pneg %p256
        %p594 = pneg %p280
        %p595 = pneg %p277
        %p596 = pneg %p306
        %p597 = pneg %p303
        %s598 = sand.u32 %s293, 1
        %s599 = scalar_lea.sflag [#allocation5], %s598
        %s600 = sand.u32 %s293, 1
        %s601 = smul.addr %s600, 8
        %s602 = scalar_lea.vmem [#allocation15], %s601
        %p603 = pneg %p332
        %p604 = pneg %p329
        %s605 = sand.u32 %s39, 1
        %s606 = scalar_lea.sflag [#allocation17], %s605
        %s607 = sand.u32 %s319, 1
        %s608 = smul.addr %s607, 32
        %s609 = scalar_lea.vmem [#allocation16], %s608
        %p610 = pneg %p358
        %p611 = pneg %p355
        %s612 = sand.u32 %s39, 1
        %s613 = scalar_lea.sflag [#allocation17], %s612
        %s614 = sand.u32 %s345, 1
        %s615 = smul.addr %s614, 8
        %s616 = scalar_lea.vmem [#allocation18], %s615
        %v617 = vld [vmem:[%s513] sm:$0xff]
        %v618 = vld [vmem:[%s523] sm:$0xff]
        %v619 = vld [vmem:[%s533] sm:$0xff]
        %v620 = vld [vmem:[#allocation9] sm:$0xff]
        %v621 = vld [vmem:[#allocation9 + $0x8] sm:$0xff]
        %v622 = vld [vmem:[#allocation9 + $0x10] sm:$0xff]
        %v623 = vld [vmem:[#allocation9 + $0x18] sm:$0xff]
        %v624 = vld [vmem:[%s6] sm:$0x1]
        %v626 = vperm.slane %v624, 0
        %vm628 = vcmask 261120
        %v630 = vsel %vm628, %v617, 0
        %632 = vmatpush.msra.mxu0 0.0
        %633 = vmatpush.msra.mxu0 0.0
        %634 = vmatpush.msra.mxu0 0.0
        %635 = vmatpush.msra.mxu0 0.0
        %636 = vmatpush.msra.mxu0 0.0
        %637 = vmatpush.msra.mxu0 0.0
        %638 = vmatpush.msra.mxu0 0.0
        %639 = vmatpush.msra.mxu0 0.0
        %640 = vmatpush.msra.mxu0 0.0
        %641 = vmatpush.msra.mxu0 0.0
        %642 = vmatpush.msra.mxu0 0.0
        %643 = vmatpush.msra.mxu0 0.0
        %644 = vmatpush.msra.mxu0 %v623
        %645 = vmatpush.msra.mxu0 %v622
        %646 = vmatpush.msra.mxu0 %v621
        %647 = vmatpush.msra.mxu0 %v620
        %648 = vmatmul.f32.gmra.mxu0 %v630
        %v649 = vpop.f32.mrf.mxu0
        %v650 = vadd.f32 %v626, %v649
        %651 = vdwg.mxu0
        %v652 = vld [vmem:[#allocation11] sm:$0xff]
        %v653 = vld [vmem:[#allocation11 + $0x8] sm:$0xff]
        %v654 = vld [vmem:[#allocation11 + $0x10] sm:$0xff]
        %v655 = vld [vmem:[#allocation11 + $0x18] sm:$0xff]
        %v656 = vld [vmem:[%s7] sm:$0x1]
        %v658 = vperm.slane %v656, 0
        %v661 = vsel %vm628, %v618, 0
        %663 = vmatpush.msra.mxu0 0.0
        %664 = vmatpush.msra.mxu0 0.0
        %665 = vmatpush.msra.mxu0 0.0
        %666 = vmatpush.msra.mxu0 0.0
        %667 = vmatpush.msra.mxu0 0.0
        %668 = vmatpush.msra.mxu0 0.0
        %669 = vmatpush.msra.mxu0 0.0
        %670 = vmatpush.msra.mxu0 0.0
        %671 = vmatpush.msra.mxu0 0.0
        %672 = vmatpush.msra.mxu0 0.0
        %673 = vmatpush.msra.mxu0 0.0
        %674 = vmatpush.msra.mxu0 0.0
        %675 = vmatpush.msra.mxu0 %v655
        %676 = vmatpush.msra.mxu0 %v654
        %677 = vmatpush.msra.mxu0 %v653
        %678 = vmatpush.msra.mxu0 %v652
        %679 = vmatmul.f32.gmra.mxu0 %v661
        %v680 = vpop.f32.mrf.mxu0
        %v681 = vadd.f32 %v658, %v680
        %682 = vdwg.mxu0
        %v683 = vld [vmem:[#allocation12] sm:$0xff]
        %v684 = vld [vmem:[#allocation12 + $0x8] sm:$0xff]
        %v685 = vld [vmem:[#allocation12 + $0x10] sm:$0xff]
        %v686 = vld [vmem:[#allocation12 + $0x18] sm:$0xff]
        %v687 = vld [vmem:[%s8] sm:$0x1]
        %v689 = vperm.slane %v687, 0
        %v692 = vsel %vm628, %v619, 0
        %694 = vmatpush.msra.mxu0 0.0
        %695 = vmatpush.msra.mxu0 0.0
        %696 = vmatpush.msra.mxu0 0.0
        %697 = vmatpush.msra.mxu0 0.0
        %698 = vmatpush.msra.mxu0 0.0
        %699 = vmatpush.msra.mxu0 0.0
        %700 = vmatpush.msra.mxu0 0.0
        %701 = vmatpush.msra.mxu0 0.0
        %702 = vmatpush.msra.mxu0 0.0
        %703 = vmatpush.msra.mxu0 0.0
        %704 = vmatpush.msra.mxu0 0.0
        %705 = vmatpush.msra.mxu0 0.0
        %706 = vmatpush.msra.mxu0 %v686
        %707 = vmatpush.msra.mxu0 %v685
        %708 = vmatpush.msra.mxu0 %v684
        %709 = vmatpush.msra.mxu0 %v683
        %710 = vmatmul.f32.gmra.mxu0 %v692
        %v711 = vpop.f32.mrf.mxu0
        %v712 = vadd.f32 %v689, %v711
        %713 = vdwg.mxu0
        %vm714 = vcmask 64512
        %v716 = vsel %vm714, %v650, 0
        %v719 = vsel %vm714, %v681, 0
        %721 = vmatpush.xpose.msra.mxu0 0.0
        %722 = vmatpush.xpose.msra.mxu0 0.0
        %723 = vmatpush.xpose.msra.mxu0 0.0
        %724 = vmatpush.xpose.msra.mxu0 0.0
        %725 = vmatpush.xpose.msra.mxu0 0.0
        %726 = vmatpush.xpose.msra.mxu0 0.0
        %727 = vmatpush.xpose.msra.mxu0 0.0
        %728 = vmatpush.xpose.msra.mxu0 0.0
        %729 = vmatpush.xpose.msra.mxu0 0.0
        %730 = vmatpush.xpose.msra.mxu0 0.0
        %731 = vmatpush.xpose.msra.mxu0 0.0
        %732 = vmatpush.xpose.msra.mxu0 0.0
        %733 = vmatpush.xpose.msra.mxu0 0.0
        %734 = vmatpush.xpose.msra.mxu0 0.0
        %735 = vmatpush.xpose.msra.mxu0 0.0
        %736 = vmatpush.xpose.msra.mxu0 %v719
        %737 = vmatmul.f32.gmra.mxu0 %v716
        %v738 = vpop.f32.mrf.mxu0
        %v739 = vadd.f32 0.0, %v738
        %740 = vdwg.mxu0
        %v741 = vmul.f32 %v739, 0.35355338
        %v742 = vsel %vm714, %v741, -inf
        %743 = vmax.xlane.f32.xlu0 %v742
        %v744 = vpop.xlane.xlu0 %743
        %v745 = vsub.f32 %v741, %v744
        %v746 = vmul.f32 %v745, 1.442695
        %v747 = vpow.pop %v746
        %v748 = vsel %vm714, %v747, 0.0
        %749 = vadd.xlane.f32.xlu0 %v748
        %v750 = vpop.xlane.xlu0 %749
        %v751 = vrcp.pop %v750
        %v752 = vmul.f32 %v750, %v751
        %v753 = vsub.f32 1.0, %v752
        %v754 = vmul.f32 %v751, %v753
        %v755 = vadd.f32 %v751, %v754
        %vm756 = vweird.f32 %v750
        %vm757 = vweird.f32 %v751
        %vm758 = vmor %vm756, %vm757
        %v759 = vsel %vm758, %v751, %v755
        %v760 = vand.u32 2147483647, %v750
        %vm761 = vcmp.eq.f32.partialorder %v760, 8.507059e+37
        %v762 = vand.u32 %v750, 2147483648
        %v763 = vor.u32 1.1754944e-38, %v762
        %v764 = vsel %vm761, %v763, %v759
        %v765 = vmul.f32 %v747, %v764
        %v767 = vsel %vm714, %v765, 0
        %769 = vmatpush.msra.mxu0 0.0
        %770 = vmatpush.msra.mxu0 0.0
        %771 = vmatpush.msra.mxu0 0.0
        %772 = vmatpush.msra.mxu0 0.0
        %773 = vmatpush.msra.mxu0 0.0
        %774 = vmatpush.msra.mxu0 0.0
        %775 = vmatpush.msra.mxu0 0.0
        %776 = vmatpush.msra.mxu0 0.0
        %777 = vmatpush.msra.mxu0 0.0
        %778 = vmatpush.msra.mxu0 0.0
        %779 = vmatpush.msra.mxu0 0.0
        %780 = vmatpush.msra.mxu0 0.0
        %781 = vmatpush.msra.mxu0 0.0
        %782 = vmatpush.msra.mxu0 0.0
        %783 = vmatpush.msra.mxu0 0.0
        %784 = vmatpush.msra.mxu0 %v712
        %785 = vmatmul.f32.gmra.mxu0 %v767
        %v786 = vpop.f32.mrf.mxu0
        %v787 = vadd.f32 0.0, %v786
        %788 = vdwg.mxu0
        %789 = vst.msk [vmem:[%s609] sm:$0xff] %vm714, %v765
        %790 = vst.msk [vmem:[#allocation2] sm:$0xff] %vm714, %v787
        %791 = vrot.lane.b32.xlu0 %v650, 120
        %v792 = vpop.permute.xlu0 %791
        %793 = vrot.lane.b32.xlu0 %v681, 120
        %v794 = vpop.permute.xlu0 %793
        %v795 = vsel %vm714, %v792, 0
        %v797 = vsel %vm714, %v794, 0
        %799 = vmatpush.xpose.msra.mxu0 0.0
        %800 = vmatpush.xpose.msra.mxu0 0.0
        %801 = vmatpush.xpose.msra.mxu0 0.0
        %802 = vmatpush.xpose.msra.mxu0 0.0
        %803 = vmatpush.xpose.msra.mxu0 0.0
        %804 = vmatpush.xpose.msra.mxu0 0.0
        %805 = vmatpush.xpose.msra.mxu0 0.0
        %806 = vmatpush.xpose.msra.mxu0 0.0
        %807 = vmatpush.xpose.msra.mxu0 0.0
        %808 = vmatpush.xpose.msra.mxu0 0.0
        %809 = vmatpush.xpose.msra.mxu0 0.0
        %810 = vmatpush.xpose.msra.mxu0 0.0
        %811 = vmatpush.xpose.msra.mxu0 0.0
        %812 = vmatpush.xpose.msra.mxu0 0.0
        %813 = vmatpush.xpose.msra.mxu0 0.0
        %814 = vmatpush.xpose.msra.mxu0 %v797
        %815 = vmatmul.f32.gmra.mxu0 %v795
        %v816 = vpop.f32.mrf.mxu0
        %v817 = vadd.f32 0.0, %v816
        %818 = vdwg.mxu0
        %v819 = vmul.f32 %v817, 0.35355338
        %v820 = vsel %vm714, %v819, -inf
        %821 = vmax.xlane.f32.xlu0 %v820
        %v822 = vpop.xlane.xlu0 %821
        %v823 = vsub.f32 %v819, %v822
        %v824 = vmul.f32 %v823, 1.442695
        %v825 = vpow.pop %v824
        %v826 = vsel %vm714, %v825, 0.0
        %827 = vadd.xlane.f32.xlu0 %v826
        %v828 = vpop.xlane.xlu0 %827
        %v829 = vrcp.pop %v828
        %v830 = vmul.f32 %v828, %v829
        %v831 = vsub.f32 1.0, %v830
        %v832 = vmul.f32 %v829, %v831
        %v833 = vadd.f32 %v829, %v832
        %vm834 = vweird.f32 %v828
        %vm835 = vweird.f32 %v829
        %vm836 = vmor %vm834, %vm835
        %v837 = vsel %vm836, %v829, %v833
        %v838 = vand.u32 2147483647, %v828
        %vm839 = vcmp.eq.f32.partialorder %v838, 8.507059e+37
        %v840 = vand.u32 %v828, 2147483648
        %v841 = vor.u32 1.1754944e-38, %v840
        %v842 = vsel %vm839, %v841, %v837
        %v843 = vmul.f32 %v825, %v842
        %845 = vrot.lane.b32.xlu0 %v712, 120
        %v846 = vpop.permute.xlu0 %845
        %v849 = vsel %vm714, %v843, 0
        %851 = vmatpush.msra.mxu0 0.0
        %852 = vmatpush.msra.mxu0 0.0
        %853 = vmatpush.msra.mxu0 0.0
        %854 = vmatpush.msra.mxu0 0.0
        %855 = vmatpush.msra.mxu0 0.0
        %856 = vmatpush.msra.mxu0 0.0
        %857 = vmatpush.msra.mxu0 0.0
        %858 = vmatpush.msra.mxu0 0.0
        %859 = vmatpush.msra.mxu0 0.0
        %860 = vmatpush.msra.mxu0 0.0
        %861 = vmatpush.msra.mxu0 0.0
        %862 = vmatpush.msra.mxu0 0.0
        %863 = vmatpush.msra.mxu0 0.0
        %864 = vmatpush.msra.mxu0 0.0
        %865 = vmatpush.msra.mxu0 0.0
        %866 = vmatpush.msra.mxu0 %v846
        %867 = vmatmul.f32.gmra.mxu0 %v849
        %v868 = vpop.f32.mrf.mxu0
        %v869 = vadd.f32 0.0, %v868
        %870 = vdwg.mxu0
        %s871 = scalar_lea.vmem %s609, 8 [#allocation16]
        %872 = vst.msk [vmem:[%s871] sm:$0xff] %vm714, %v843
        %874 = vrot.lane.b32.xlu0 %v869, 8
        %v875 = vpop.permute.xlu0 %874
        %vm877 = vcmask 130112
        %878 = vst.msk [vmem:[#allocation2] sm:$0xff] %vm877, %v875
        %879 = vrot.lane.b32.xlu0 %v650, 112
        %v880 = vpop.permute.xlu0 %879
        %881 = vrot.lane.b32.xlu0 %v681, 112
        %v882 = vpop.permute.xlu0 %881
        %v883 = vsel %vm714, %v880, 0
        %v885 = vsel %vm714, %v882, 0
        %887 = vmatpush.xpose.msra.mxu0 0.0
        %888 = vmatpush.xpose.msra.mxu0 0.0
        %889 = vmatpush.xpose.msra.mxu0 0.0
        %890 = vmatpush.xpose.msra.mxu0 0.0
        %891 = vmatpush.xpose.msra.mxu0 0.0
        %892 = vmatpush.xpose.msra.mxu0 0.0
        %893 = vmatpush.xpose.msra.mxu0 0.0
        %894 = vmatpush.xpose.msra.mxu0 0.0
        %895 = vmatpush.xpose.msra.mxu0 0.0
        %896 = vmatpush.xpose.msra.mxu0 0.0
        %897 = vmatpush.xpose.msra.mxu0 0.0
        %898 = vmatpush.xpose.msra.mxu0 0.0
        %899 = vmatpush.xpose.msra.mxu0 0.0
        %900 = vmatpush.xpose.msra.mxu0 0.0
        %901 = vmatpush.xpose.msra.mxu0 0.0
        %902 = vmatpush.xpose.msra.mxu0 %v885
        %903 = vmatmul.f32.gmra.mxu0 %v883
        %v904 = vpop.f32.mrf.mxu0
        %v905 = vadd.f32 0.0, %v904
        %906 = vdwg.mxu0
        %v907 = vmul.f32 %v905, 0.35355338
        %v908 = vsel %vm714, %v907, -inf
        %909 = vmax.xlane.f32.xlu0 %v908
        %v910 = vpop.xlane.xlu0 %909
        %v911 = vsub.f32 %v907, %v910
        %v912 = vmul.f32 %v911, 1.442695
        %v913 = vpow.pop %v912
        %v914 = vsel %vm714, %v913, 0.0
        %915 = vadd.xlane.f32.xlu0 %v914
        %v916 = vpop.xlane.xlu0 %915
        %v917 = vrcp.pop %v916
        %v918 = vmul.f32 %v916, %v917
        %v919 = vsub.f32 1.0, %v918
        %v920 = vmul.f32 %v917, %v919
        %v921 = vadd.f32 %v917, %v920
        %vm922 = vweird.f32 %v916
        %vm923 = vweird.f32 %v917
        %vm924 = vmor %vm922, %vm923
        %v925 = vsel %vm924, %v917, %v921
        %v926 = vand.u32 2147483647, %v916
        %vm927 = vcmp.eq.f32.partialorder %v926, 8.507059e+37
        %v928 = vand.u32 %v916, 2147483648
        %v929 = vor.u32 1.1754944e-38, %v928
        %v930 = vsel %vm927, %v929, %v925
        %v931 = vmul.f32 %v913, %v930
        %932 = vrot.lane.b32.xlu0 %v712, 112
        %v933 = vpop.permute.xlu0 %932
        %v936 = vsel %vm714, %v931, 0
        %938 = vmatpush.msra.mxu0 0.0
        %939 = vmatpush.msra.mxu0 0.0
        %940 = vmatpush.msra.mxu0 0.0
        %941 = vmatpush.msra.mxu0 0.0
        %942 = vmatpush.msra.mxu0 0.0
        %943 = vmatpush.msra.mxu0 0.0
        %944 = vmatpush.msra.mxu0 0.0
        %945 = vmatpush.msra.mxu0 0.0
        %946 = vmatpush.msra.mxu0 0.0
        %947 = vmatpush.msra.mxu0 0.0
        %948 = vmatpush.msra.mxu0 0.0
        %949 = vmatpush.msra.mxu0 0.0
        %950 = vmatpush.msra.mxu0 0.0
        %951 = vmatpush.msra.mxu0 0.0
        %952 = vmatpush.msra.mxu0 0.0
        %953 = vmatpush.msra.mxu0 %v933
        %954 = vmatmul.f32.gmra.mxu0 %v936
        %v955 = vpop.f32.mrf.mxu0
        %v956 = vadd.f32 0.0, %v955
        %957 = vdwg.mxu0
        %s958 = scalar_lea.vmem %s609, 16 [#allocation16]
        %959 = vst.msk [vmem:[%s958] sm:$0xff] %vm714, %v931
        %961 = vrot.lane.b32.xlu0 %v956, 16
        %v962 = vpop.permute.xlu0 %961
        %vm964 = vcmask 195712
        %965 = vst.msk [vmem:[#allocation2] sm:$0xff] %vm964, %v962
        %966 = vrot.lane.b32.xlu0 %v650, 104
        %v967 = vpop.permute.xlu0 %966
        %968 = vrot.lane.b32.xlu0 %v681, 104
        %v969 = vpop.permute.xlu0 %968
        %v970 = vsel %vm714, %v967, 0
        %v972 = vsel %vm714, %v969, 0
        %974 = vmatpush.xpose.msra.mxu0 0.0
        %975 = vmatpush.xpose.msra.mxu0 0.0
        %976 = vmatpush.xpose.msra.mxu0 0.0
        %977 = vmatpush.xpose.msra.mxu0 0.0
        %978 = vmatpush.xpose.msra.mxu0 0.0
        %979 = vmatpush.xpose.msra.mxu0 0.0
        %980 = vmatpush.xpose.msra.mxu0 0.0
        %981 = vmatpush.xpose.msra.mxu0 0.0
        %982 = vmatpush.xpose.msra.mxu0 0.0
        %983 = vmatpush.xpose.msra.mxu0 0.0
        %984 = vmatpush.xpose.msra.mxu0 0.0
        %985 = vmatpush.xpose.msra.mxu0 0.0
        %986 = vmatpush.xpose.msra.mxu0 0.0
        %987 = vmatpush.xpose.msra.mxu0 0.0
        %988 = vmatpush.xpose.msra.mxu0 0.0
        %989 = vmatpush.xpose.msra.mxu0 %v972
        %990 = vmatmul.f32.gmra.mxu0 %v970
        %v991 = vpop.f32.mrf.mxu0
        %v992 = vadd.f32 0.0, %v991
        %993 = vdwg.mxu0
        %v994 = vmul.f32 %v992, 0.35355338
        %v995 = vsel %vm714, %v994, -inf
        %996 = vmax.xlane.f32.xlu0 %v995
        %v997 = vpop.xlane.xlu0 %996
        %v998 = vsub.f32 %v994, %v997
        %v999 = vmul.f32 %v998, 1.442695
        %v1000 = vpow.pop %v999
        %v1001 = vsel %vm714, %v1000, 0.0
        %1002 = vadd.xlane.f32.xlu0 %v1001
        %v1003 = vpop.xlane.xlu0 %1002
        %v1004 = vrcp.pop %v1003
        %v1005 = vmul.f32 %v1003, %v1004
        %v1006 = vsub.f32 1.0, %v1005
        %v1007 = vmul.f32 %v1004, %v1006
        %v1008 = vadd.f32 %v1004, %v1007
        %vm1009 = vweird.f32 %v1003
        %vm1010 = vweird.f32 %v1004
        %vm1011 = vmor %vm1009, %vm1010
        %v1012 = vsel %vm1011, %v1004, %v1008
        %v1013 = vand.u32 2147483647, %v1003
        %vm1014 = vcmp.eq.f32.partialorder %v1013, 8.507059e+37
        %v1015 = vand.u32 %v1003, 2147483648
        %v1016 = vor.u32 1.1754944e-38, %v1015
        %v1017 = vsel %vm1014, %v1016, %v1012
        %v1018 = vmul.f32 %v1000, %v1017
        %1019 = vrot.lane.b32.xlu0 %v712, 104
        %v1020 = vpop.permute.xlu0 %1019
        %v1023 = vsel %vm714, %v1018, 0
        %1025 = vmatpush.msra.mxu0 0.0
        %1026 = vmatpush.msra.mxu0 0.0
        %1027 = vmatpush.msra.mxu0 0.0
        %1028 = vmatpush.msra.mxu0 0.0
        %1029 = vmatpush.msra.mxu0 0.0
        %1030 = vmatpush.msra.mxu0 0.0
        %1031 = vmatpush.msra.mxu0 0.0
        %1032 = vmatpush.msra.mxu0 0.0
        %1033 = vmatpush.msra.mxu0 0.0
        %1034 = vmatpush.msra.mxu0 0.0
        %1035 = vmatpush.msra.mxu0 0.0
        %1036 = vmatpush.msra.mxu0 0.0
        %1037 = vmatpush.msra.mxu0 0.0
        %1038 = vmatpush.msra.mxu0 0.0
        %1039 = vmatpush.msra.mxu0 0.0
        %1040 = vmatpush.msra.mxu0 %v1020
        %1041 = vmatmul.f32.gmra.mxu0 %v1023
        %v1042 = vpop.f32.mrf.mxu0
        %v1043 = vadd.f32 0.0, %v1042
        %1044 = vdwg.mxu0
        %s1045 = scalar_lea.vmem %s609, 24 [#allocation16]
        %1046 = vst.msk [vmem:[%s1045] sm:$0xff] %vm714, %v1018
        %1048 = vrot.lane.b32.xlu0 %v1043, 24
        %v1049 = vpop.permute.xlu0 %1048
        %vm1051 = vcmask 261312
        %1052 = vst.msk [vmem:[#allocation2] sm:$0xff] %vm1051, %v1049
        %v1053 = vld [vmem:[#allocation2] sm:$0xff]
        %1054 = vst.msk [vmem:[%s616] sm:$0xff] %vm628, %v1053
        %v1055 = vld [vmem:[#allocation14] sm:$0xff]
        %v1056 = vld [vmem:[#allocation14 + $0x8] sm:$0xff]
        %v1057 = vld [vmem:[#allocation14 + $0x10] sm:$0xff]
        %v1058 = vld [vmem:[#allocation14 + $0x18] sm:$0xff]
        %v1059 = vld [vmem:[%s10] sm:$0x1]
        %v1061 = vperm.slane %v1059, 0
        %v1064 = vsel %vm628, %v1053, 0
        %1066 = vmatpush.msra.mxu0 0.0
        %1067 = vmatpush.msra.mxu0 0.0
        %1068 = vmatpush.msra.mxu0 0.0
        %1069 = vmatpush.msra.mxu0 0.0
        %1070 = vmatpush.msra.mxu0 0.0
        %1071 = vmatpush.msra.mxu0 0.0
        %1072 = vmatpush.msra.mxu0 0.0
        %1073 = vmatpush.msra.mxu0 0.0
        %1074 = vmatpush.msra.mxu0 0.0
        %1075 = vmatpush.msra.mxu0 0.0
        %1076 = vmatpush.msra.mxu0 0.0
        %1077 = vmatpush.msra.mxu0 0.0
        %1078 = vmatpush.msra.mxu0 %v1058
        %1079 = vmatpush.msra.mxu0 %v1057
        %1080 = vmatpush.msra.mxu0 %v1056
        %1081 = vmatpush.msra.mxu0 %v1055
        %1082 = vmatmul.f32.gmra.mxu0 %v1064
        %v1083 = vpop.f32.mrf.mxu0
        %v1084 = vadd.f32 %v1061, %v1083
        %1085 = vdwg.mxu0
        %1086 = vst.msk [vmem:[%s602] sm:$0xff] %vm628, %v1084
        %s1087 = sand.u32 %s293, 1
        %s1088 = scalar_lea.sflag [#allocation5], %s1087
        %s1089 = sand.u32 %s293, 1
        %s1090 = smul.addr %s1089, 8
        %s1091 = scalar_lea.vmem [#allocation15], %s1090
        %s1092 = sand.u32 %s39, 1
        %s1093 = scalar_lea.sflag [#allocation17], %s1092
        %s1094 = sand.u32 %s319, 1
        %s1095 = smul.addr %s1094, 32
        %s1096 = scalar_lea.vmem [#allocation16], %s1095
        %s1097 = sand.u32 %s39, 1
        %s1098 = scalar_lea.sflag [#allocation17], %s1097
        %s1099 = sand.u32 %s345, 1
        %s1100 = smul.addr %s1099, 8
        %s1101 = scalar_lea.vmem [#allocation18], %s1100
        // Predicated region
        $region93: #{tpu_custom_call.1} parent=63 // pred_check
          %p1102 = pneg %p303
        $region94: #{tpu_custom_call.1} parent=63 // pred_check_branch
          %1104 = sbr.rel (%p1102) target = $region96
        $region95: #{tpu_custom_call.1} parent=63 // pred_region
          %1106 = vsyncadd %s1088, 0
          %s1107 = smul.addr %s39, 8
          %s1108 = scalar_lea.hbm %s11, %s1107
          %s1110 = sshll.u32 %s1091, 4
          %s1111 = int_to_ptr.vmem [resolvable:$true] %s1110
          %s1112 = sshll.u32 %s1108, 4
          %s1113 = int_to_ptr.hbm [resolvable:$true] %s1112
          %1115 = dma.vmem_to_hbm [thread:$0]  %s1111, 128, %s1113, %s1088
        $region96: #{tpu_custom_call.1} parent=63 // pred_fallthru
          _
        // Predicated region
        $region97: #{tpu_custom_call.1} parent=63 // pred_check
          %p1116 = pneg %p329
        $region98: #{tpu_custom_call.1} parent=63 // pred_check_branch
          %1118 = sbr.rel (%p1116) target = $region100
        $region99: #{tpu_custom_call.1} parent=63 // pred_region
          %1120 = vsyncadd %s1093, 0
          %s1121 = smul.addr %s39, 4
          %s1122 = smul.addr %s1121, 8
          %s1123 = scalar_lea.hbm %s12, %s1122
          %s1124 = sshll.u32 %s1096, 4
          %s1125 = int_to_ptr.vmem [resolvable:$true] %s1124
          %s1126 = sshll.u32 %s1123, 4
          %s1127 = int_to_ptr.hbm [resolvable:$true] %s1126
          %1132 = dma.vmem_to_hbm [thread:$0]  %s1125, 512, %s1127, %s1093, 128, 128, 8
        $region100: #{tpu_custom_call.1} parent=63 // pred_fallthru
          _
        // Predicated region
        $region101: #{tpu_custom_call.1} parent=63 // pred_check
          %p1133 = pneg %p355
        $region102: #{tpu_custom_call.1} parent=63 // pred_check_branch
          %1135 = sbr.rel (%p1133) target = $region104
        $region103: #{tpu_custom_call.1} parent=63 // pred_region
          %1137 = vsyncadd %s1098, 0
          %s1138 = smul.addr %s39, 8
          %s1139 = scalar_lea.hbm %s13, %s1138
          %s1141 = sshll.u32 %s1101, 4
          %s1142 = int_to_ptr.vmem [resolvable:$true] %s1141
          %s1143 = sshll.u32 %s1139, 4
          %s1144 = int_to_ptr.hbm [resolvable:$true] %s1143
          %1146 = dma.vmem_to_hbm [thread:$0]  %s1142, 128, %s1144, %s1098
        $region104: #{tpu_custom_call.1} parent=63 // pred_fallthru
          _
      $region64: #{tpu_custom_call.1} parent=5 // pred_fallthru
        _
      %p1147 = scmp.le.s32.totalorder 2, %s34
      // Predicated region
      $region105: #{tpu_custom_call.1} parent=5 // pred_check
        %p1148 = pneg %p1147
      $region106: #{tpu_custom_call.1} parent=5 // pred_check_branch
        %1150 = sbr.rel (%p1148) target = $region108
      $region107: #{tpu_custom_call.1} parent=5 // pred_region
        %s1151 = ssub.s32 %s34, 2
        // Predicated region
        $region109: #{tpu_custom_call.1} parent=107 // pred_check
          %p1152 = pneg %p309
        $region110: #{tpu_custom_call.1} parent=107 // pred_check_branch
          %1154 = sbr.rel (%p1152) target = $region112
        $region111: #{tpu_custom_call.1} parent=107 // pred_region
          %s1155 = sand.u32 %s294, 1
          %s1156 = scalar_lea.sflag [#allocation5], %s1155
          %s1157 = sand.u32 %s294, 1
          %s1158 = smul.addr %s1157, 8
          %s1159 = scalar_lea.vmem [#allocation15], %s1158
          %1161 = dma.done %s1156, 128
        $region112: #{tpu_custom_call.1} parent=107 // pred_fallthru
          _
        // Predicated region
        $region113: #{tpu_custom_call.1} parent=107 // pred_check
          %p1162 = pneg %p335
        $region114: #{tpu_custom_call.1} parent=107 // pred_check_branch
          %1164 = sbr.rel (%p1162) target = $region116
        $region115: #{tpu_custom_call.1} parent=107 // pred_region
          %s1165 = sand.u32 %s40, 1
          %s1166 = scalar_lea.sflag [#allocation17], %s1165
          %s1167 = sand.u32 %s320, 1
          %s1168 = smul.addr %s1167, 32
          %s1169 = scalar_lea.vmem [#allocation16], %s1168
          %1171 = dma.done %s1166, 512
        $region116: #{tpu_custom_call.1} parent=107 // pred_fallthru
          _
        // Predicated region
        $region117: #{tpu_custom_call.1} parent=107 // pred_check
          %p1172 = pneg %p361
        $region118: #{tpu_custom_call.1} parent=107 // pred_check_branch
          %1174 = sbr.rel (%p1172) target = $region120
        $region119: #{tpu_custom_call.1} parent=107 // pred_region
          %s1175 = sand.u32 %s40, 1
          %s1176 = scalar_lea.sflag [#allocation17], %s1175
          %s1177 = sand.u32 %s346, 1
          %s1178 = smul.addr %s1177, 8
          %s1179 = scalar_lea.vmem [#allocation18], %s1178
          %1181 = dma.done %s1176, 128
        $region120: #{tpu_custom_call.1} parent=107 // pred_fallthru
          _
      $region108: #{tpu_custom_call.1} parent=5 // pred_fallthru
        _
    $region6: #{tpu_custom_call.1} parent=1 // loop_footer
      %s38 = sadd.s32 1, %s34
    $region7: #{tpu_custom_call.1} parent=1 // loop_footer_branch
      %33 = sbr.rel target = $region3
    $region8: #{tpu_custom_call.1} parent=1 // loop_exit
      _
    %1182 = vsyncpa [#allocation4], 1
    %s1183 = scalar_lea.sflag [#allocation4], 1
    %1184 = vsyncpa %s1183, 1
    %1185 = vsyncpa [#allocation7], 1
    %s1186 = scalar_lea.sflag [#allocation7], 1
    %1187 = vsyncpa %s1186, 1
    %1188 = vsyncpa [#allocation10], 1
    %1189 = vsyncpa [#allocation13], 1
    %1190 = vsyncpa [#allocation5], 1
    %s1191 = scalar_lea.sflag [#allocation5], 1
    %1192 = vsyncpa %s1191, 1
    %1193 = vsyncpa [#allocation17], 1
    %s1194 = scalar_lea.sflag [#allocation17], 1
    %1195 = vsyncpa %s1194, 1

</llo_original>
